<compile_context>
chip_gen: v7x
topology: tpu7x:2x2x1
jax: 0.10.0
libtpu: 0.0.40
codegen_flags: <defaults>
</compile_context>

<pallas_src>
import functools

import jax
import jax.numpy as jnp
from jax import lax
from jax.experimental import pallas as pl
from jax.experimental.pallas import tpu as pltpu


def _round_up(x, m):
    return ((x + m - 1) // m) * m


def _maybe_vmem_limit(bytes_needed):
    """Raise the scoped-VMEM limit only if the working set needs it."""
    if bytes_needed <= 24 * 1024 * 1024:
        return None                                   # default limit is plenty
    return min(int(bytes_needed) + (8 << 20), 64 * 1024 * 1024)  # v7x physical cap


# --------------------------------------------------------------------------
# Fused kernel (small graphs): projection + attention in one call.
# --------------------------------------------------------------------------
def _fused_kernel(x_ref, w_ref, b_ref, a_ref, o_ref, *,
                  n_valid, mask_cols, compute_dtype, precision):
    # h = x @ W^T + b : contract the (128-padded, lane-dense) f_in axis.
    h = lax.dot_general(x_ref[...], w_ref[...], (((1,), (1,)), ((), ())),
                        preferred_element_type=jnp.float32,
                        precision=precision)
    h = h + b_ref[...]
    h_c = h.astype(compute_dtype)
    # g = h @ A   (associativity rewrite: h @ (A @ h^T) == (h @ A) @ h^T).
    g = lax.dot_general(h_c, a_ref[...], (((1,), (0,)), ((), ())),
                        preferred_element_type=jnp.float32,
                        precision=precision).astype(compute_dtype)
    # scores = g @ h^T : contract the feature axis of both operands.
    s = lax.dot_general(g, h_c, (((1,), (1,)), ((), ())),
                        preferred_element_type=jnp.float32,
                        precision=precision)
    if mask_cols:
        col = lax.broadcasted_iota(jnp.int32, s.shape, 1)
        s = jnp.where(col < n_valid, s, -1e30)        # padded keys -> ~-inf
    m = jnp.max(s, axis=1, keepdims=True)
    p = jnp.exp(s - m)
    l = jnp.sum(p, axis=1, keepdims=True)
    attn = (p * (1.0 / l)).astype(compute_dtype)      # exact normalization
    o_ref[...] = lax.dot_general(attn, h_c, (((1,), (0,)), ((), ())),
                                 preferred_element_type=jnp.float32,
                                 precision=precision)


# --------------------------------------------------------------------------
# Pass 1 (tiled path): h = x @ W^T + b ;  g = h @ A      (row-tiled)
# --------------------------------------------------------------------------
def _project_kernel(x_ref, w_ref, b_ref, a_ref, h_ref, g_ref, *, precision):
    h = lax.dot_general(x_ref[...], w_ref[...], (((1,), (1,)), ((), ())),
                        preferred_element_type=jnp.float32,
                        precision=precision)          # (bm, f_pad) f32
    h = h + b_ref[...]
    h_c = h.astype(h_ref.dtype)
    h_ref[...] = h_c
    g = lax.dot_general(h_c, a_ref[...], (((1,), (0,)), ((), ())),
                        preferred_element_type=jnp.float32,
                        precision=precision)          # (bm, f_pad) f32
    g_ref[...] = g.astype(g_ref.dtype)


# --------------------------------------------------------------------------
# Pass 2 (tiled path): flash-style softmax(g @ h^T) @ h, online softmax,
#                      output block used directly as the accumulator.
# --------------------------------------------------------------------------
def _attn_kernel(g_ref, h_ref, o_ref, m_sc, l_sc, *,
                 n_valid, block_k, mask_cols, h_resident, precision):
    k = pl.program_id(1)

    @pl.when(k == 0)
    def _init():
        m_sc[...] = jnp.full_like(m_sc, -jnp.inf)
        l_sc[...] = jnp.zeros_like(l_sc)
        o_ref[...] = jnp.zeros_like(o_ref)

    g = g_ref[...]                                    # (bm, f_pad)
    if h_resident:
        # h is VMEM-resident (whole array, constant index map): slice the
        # current column tile in-place, no HBM re-read per row tile.
        align = block_k & (-block_k)                  # largest pow2 divisor
        start = pl.multiple_of(k * block_k, align)
        h_t = h_ref[pl.ds(start, block_k), :]         # (bk, f_pad)
    else:
        h_t = h_ref[...]                              # streamed (bk, f_pad)

    # scores tile = g @ h^T : contract the feature (lane) axis of both.
    s = lax.dot_general(g, h_t, (((1,), (1,)), ((), ())),
                        preferred_element_type=jnp.float32,
                        precision=precision)          # (bm, bk) f32
    if mask_cols:
        col = k * block_k + lax.broadcasted_iota(jnp.int32, s.shape, 1)
        s = jnp.where(col < n_valid, s, -1e30)        # padded keys -> ~-inf

    m_prev = m_sc[...]
    m_new = jnp.maximum(m_prev, jnp.max(s, axis=1, keepdims=True))
    alpha = jnp.exp(m_prev - m_new)
    p = jnp.exp(s - m_new)
    l_sc[...] = alpha * l_sc[...] + jnp.sum(p, axis=1, keepdims=True)
    m_sc[...] = m_new
    pv = lax.dot_general(p.astype(h_t.dtype), h_t, (((1,), (0,)), ((), ())),
                         preferred_element_type=jnp.float32,
                         precision=precision)
    o_ref[...] = alpha * o_ref[...] + pv              # resident f32 accumulator

    @pl.when(k == pl.num_programs(1) - 1)
    def _finalize():
        o_ref[...] = o_ref[...] * (1.0 / l_sc[...])   # exact divide


# --------------------------------------------------------------------------
# Wrapper
# --------------------------------------------------------------------------
def graph_attention_layer(adjacency_matrix, node_features, weight, bias,
                          attn_weights, *, compute_dtype=jnp.bfloat16,
                          block_m=512, fuse_max_rows=1024,
                          h_resident_budget_bytes=16 * 1024 * 1024):
    """Pallas implementation of GraphAttentionLayer.forward.

    adjacency_matrix: (N, N)          -- unused (matches the PyTorch module)
    node_features:    (N, F_in)
    weight:           (F_out, F_in)    (nn.Linear convention)
    bias:             (F_out,)
    attn_weights:     (F_out, F_out)
    returns:          (N, F_out) float32
    """
    del adjacency_matrix  # not used by the reference forward pass
    n, f_in = node_features.shape
    f_out = weight.shape[0]
    cd = jnp.dtype(compute_dtype)
    itemsize = cd.itemsize
    # f32 compute path gets full MXU precision so it tracks the f32 module.
    precision = lax.Precision.HIGHEST if cd == jnp.dtype(jnp.float32) else None

    # Lane-dense zero padding of BOTH feature axes (exact).
    f_in_pad = _round_up(f_in, 128)
    f_pad = _round_up(f_out, 128)

    fused = n <= fuse_max_rows
    if fused:
        bm = bk = n_pad = _round_up(n, 16)
        num_row_tiles = 1
    else:
        num_row_tiles = pl.cdiv(n, block_m)
        bm = _round_up(pl.cdiv(n, num_row_tiles), 16)  # minimal-padding row tile
        n_pad = bm * num_row_tiles
        bk = bm
    mask_cols = (n_pad != n)

    x = jnp.pad(node_features,
                ((0, n_pad - n), (0, f_in_pad - f_in))).astype(cd)
    w = jnp.pad(weight, ((0, f_pad - f_out), (0, f_in_pad - f_in))).astype(cd)
    b = jnp.pad(bias, (0, f_pad - f_out)).reshape(1, f_pad).astype(jnp.float32)
    a = jnp.pad(attn_weights,
                ((0, f_pad - f_out), (0, f_pad - f_out))).astype(cd)

    # ---- Fused single-call path for small graphs.
    if fused:
        flops = 2 * n_pad * (f_in_pad * f_pad + f_pad * f_pad
                             + 2 * n_pad * f_pad)
        bytes_acc = (itemsize * (n_pad * f_in_pad + f_pad * f_in_pad
                                 + f_pad * f_pad)
                     + 4 * (f_pad + n_pad * f_pad))
        vmem_need = (2 * itemsize * (n_pad * f_in_pad + f_pad * f_in_pad
                                     + f_pad * f_pad)
                     + 2 * 4 * n_pad * f_pad          # double-buffered f32 out
                     + 3 * 4 * n_pad * n_pad          # s / p temporaries
                     + 4 * 2 * n_pad * f_pad)         # h / g temporaries
        out = pl.pallas_call(
            functools.partial(_fused_kernel, n_valid=n, mask_cols=mask_cols,
                              compute_dtype=cd, precision=precision),
            out_shape=jax.ShapeDtypeStruct((n_pad, f_pad), jnp.float32),
            grid_spec=pltpu.PrefetchScalarGridSpec(
                num_scalar_prefetch=0,
                grid=(1,),
                in_specs=[
                    pl.BlockSpec((n_pad, f_in_pad), lambda i: (0, 0)),
                    pl.BlockSpec((f_pad, f_in_pad), lambda i: (0, 0)),
                    pl.BlockSpec((1, f_pad), lambda i: (0, 0)),
                    pl.BlockSpec((f_pad, f_pad), lambda i: (0, 0)),
                ],
                out_specs=pl.BlockSpec((n_pad, f_pad), lambda i: (0, 0))),
            compiler_params=pltpu.CompilerParams(
                dimension_semantics=("arbitrary",),
                vmem_limit_bytes=_maybe_vmem_limit(vmem_need)),
            cost_estimate=pl.CostEstimate(
                flops=int(flops), transcendentals=int(n_pad * n_pad),
                bytes_accessed=int(bytes_acc)),
        )(x, w, b, a)
        return out[:n, :f_out]

    # ---- Pass 1: projection (h, g), row-tiled, parameters VMEM-resident.
    grid_rows = n_pad // bm
    p1_flops = 2 * n_pad * f_pad * (f_in_pad + f_pad)
    p1_bytes = (itemsize * (n_pad * f_in_pad + f_pad * f_in_pad
                            + f_pad * f_pad + 2 * n_pad * f_pad) + 4 * f_pad)
    p1_vmem = (2 * itemsize * (bm * f_in_pad + f_pad * f_in_pad
                               + f_pad * f_pad + 2 * bm * f_pad)
               + 4 * 2 * f_pad + 4 * 2 * bm * f_pad)

    h_c, g_c = pl.pallas_call(
        functools.partial(_project_kernel, precision=precision),
        out_shape=(jax.ShapeDtypeStruct((n_pad, f_pad), cd),
                   jax.ShapeDtypeStruct((n_pad, f_pad), cd)),
        grid_spec=pltpu.PrefetchScalarGridSpec(
            num_scalar_prefetch=0,
            grid=(grid_rows,),
            in_specs=[
                pl.BlockSpec((bm, f_in_pad), lambda i: (i, 0)),
                pl.BlockSpec((f_pad, f_in_pad), lambda i: (0, 0)),
                pl.BlockSpec((1, f_pad), lambda i: (0, 0)),
                pl.BlockSpec((f_pad, f_pad), lambda i: (0, 0)),
            ],
            out_specs=[
                pl.BlockSpec((bm, f_pad), lambda i: (i, 0)),
                pl.BlockSpec((bm, f_pad), lambda i: (i, 0)),
            ]),
        compiler_params=pltpu.CompilerParams(
            dimension_semantics=("parallel",),
            vmem_limit_bytes=_maybe_vmem_limit(p1_vmem)),
        cost_estimate=pl.CostEstimate(flops=int(p1_flops), transcendentals=0,
                                      bytes_accessed=int(p1_bytes)),
    )(x, w, b, a)

    # ---- Pass 2: tiled attention, online softmax, h resident when it fits.
    h_bytes = n_pad * f_pad * itemsize
    h_resident = (2 * h_bytes) <= h_resident_budget_bytes
    if h_resident:
        h_spec = pl.BlockSpec((n_pad, f_pad), lambda i, k: (0, 0))
        h_vmem = 2 * h_bytes
        h_traffic = h_bytes                            # read once
    else:
        h_spec = pl.BlockSpec((bk, f_pad), lambda i, k: (k, 0))
        h_vmem = 2 * bk * f_pad * itemsize
        h_traffic = grid_rows * h_bytes                # re-streamed per row tile

    p2_flops = 4 * n_pad * n_pad * f_pad
    p2_bytes = n_pad * f_pad * itemsize + h_traffic + 4 * n_pad * f_pad
    p2_vmem = (h_vmem + 2 * bm * f_pad * itemsize + 2 * 4 * bm * f_pad
               + 2 * 4 * bm + 3 * 4 * bm * bk)

    attn_kernel = functools.partial(
        _attn_kernel, n_valid=n, block_k=bk, mask_cols=mask_cols,
        h_resident=h_resident, precision=precision)

    out = pl.pallas_call(
        attn_kernel,
        out_shape=jax.ShapeDtypeStruct((n_pad, f_pad), jnp.float32),
        grid_spec=pltpu.PrefetchScalarGridSpec(
            num_scalar_prefetch=0,
            grid=(n_pad // bm, n_pad // bk),
            in_specs=[
                pl.BlockSpec((bm, f_pad), lambda i, k: (i, 0)),  # g row tile
                h_spec,                                          # h (resident/stream)
            ],
            out_specs=pl.BlockSpec((bm, f_pad), lambda i, k: (i, 0)),
            scratch_shapes=[
                pltpu.VMEM((bm, 1), jnp.float32),        # running max
                pltpu.VMEM((bm, 1), jnp.float32),        # running denom
            ]),
        compiler_params=pltpu.CompilerParams(
            dimension_semantics=("parallel", "arbitrary"),
            vmem_limit_bytes=_maybe_vmem_limit(p2_vmem)),
        cost_estimate=pl.CostEstimate(flops=int(p2_flops),
                                      transcendentals=int(n_pad * n_pad),
                                      bytes_accessed=int(p2_bytes)),
    )(g_c, h_c)

    return out[:n, :f_out]


# --------------------------------------------------------------------------
# References
# --------------------------------------------------------------------------
def _reference(adjacency_matrix, node_features, weight, bias, attn_weights):
    """Plain f32 reference matching the PyTorch module exactly."""
    del adjacency_matrix
    with jax.default_matmul_precision("float32"):
        h = node_features @ weight.T + bias
        scores = h @ (attn_weights @ h.T)
        attn = jax.nn.softmax(scores, axis=1)
        return attn @ h


def _reference_matched(adjacency_matrix, node_features, weight, bias,
                       attn_weights, compute_dtype):
    """Reference applying the same low-precision casts as the kernel."""
    del adjacency_matrix
    f32 = jnp.float32
    up = lambda t: t.astype(compute_dtype).astype(f32)
    with jax.default_matmul_precision("float32"):
        h = up(node_features) @ up(weight).T + bias.astype(f32)
        h = h.astype(compute_dtype).astype(f32)
        g = h @ up(attn_weights)
        g = g.astype(compute_dtype).astype(f32)
        scores = g @ h.T
        attn = jax.nn.softmax(scores, axis=1)
        attn = attn.astype(compute_dtype).astype(f32)
        return attn @ h


# --------------------------------------------------------------------------
# Demo / self-test
# --------------------------------------------------------------------------
if __name__ == "__main__":
    def make_case(key, n, f_in, f_out, attn_scale=1.0):
        k_x, k_adj, k_w, k_b, k_a = jax.random.split(key, 5)
        x = jax.random.normal(k_x, (n, f_in), dtype=jnp.float32)
        adj = (jax.random.uniform(k_adj, (n, n)) > 0.5).astype(jnp.float32)
        bound = 1.0 / (f_in ** 0.5)
        w = jax.random.uniform(k_w, (f_out, f_in), minval=-bound, maxval=bound,
                               dtype=jnp.float32)
        b = jax.random.uniform(k_b, (f_out,), minval=-bound, maxval=bound,
                               dtype=jnp.float32)
        a = attn_scale * jax.random.normal(k_a, (f_out, f_out),
                                           dtype=jnp.float32)
        return adj, x, w, b, a

    root = jax.random.PRNGKey(0)
    key1, key2 = jax.random.split(root, 2)

    # Case 1: module's toy size, fused kernel, f32 path vs exact module ref.
    adj, x, w, b, a = make_case(key1, n=16, f_in=32, f_out=32)
    out_f32 = jax.block_until_ready(
        graph_attention_layer(adj, x, w, b, a, compute_dtype=jnp.float32))
    ref_f32 = _reference(adj, x, w, b, a)
    assert out_f32.shape == (16, 32)
    assert jnp.allclose(out_f32, ref_f32, atol=2e-3, rtol=2e-3), \
        "fused f32 path mismatch vs module reference"

    # Case 1b: default bf16 MXU path, checked against a cast-matched reference.
    out_bf16 = jax.block_until_ready(graph_attention_layer(adj, x, w, b, a))
    ref_bf16 = _reference_matched(adj, x, w, b, a, jnp.bfloat16)
    assert jnp.allclose(out_bf16, ref_bf16, atol=3e-2, rtol=3e-2), \
        "fused bf16 path mismatch vs cast-matched reference"

    # Case 2: larger graph (N=300, F_out=72).  attn weights are scaled so the
    # softmax is not a degenerate one-hot (keeps the f32 tolerance meaningful).
    adj2, x2, w2, b2, a2 = make_case(key2, n=300, f_in=40, f_out=72,
                                     attn_scale=0.2)
    ref2 = _reference(adj2, x2, w2, b2, a2)

    # 2a: fused single-call path (N <= fuse_max_rows).
    out2a = jax.block_until_ready(
        graph_attention_layer(adj2, x2, w2, b2, a2, compute_dtype=jnp.float32))
    assert out2a.shape == (300, 72)
    assert jnp.allclose(out2a, ref2, atol=2e-3, rtol=2e-3), \
        "fused f32 path (N=300) mismatch vs module reference"

    # 2b: tiled two-pass path, h VMEM-resident in Pass 2 (3 x 112-row tiles,
    # online softmax, padded-key masking: N=300 -> n_pad=336).
    out2b = jax.block_until_ready(
        graph_attention_layer(adj2, x2, w2, b2, a2, compute_dtype=jnp.float32,
                              fuse_max_rows=0, block_m=128))
    assert jnp.allclose(out2b, ref2, atol=2e-3, rtol=2e-3), \
        "tiled (h-resident) f32 path mismatch vs module reference"

    # 2c: tiled path with h streamed per column tile (resident budget = 0).
    out2c = jax.block_until_ready(
        graph_attention_layer(adj2, x2, w2, b2, a2, compute_dtype=jnp.float32,
                              fuse_max_rows=0, block_m=128,
                              h_resident_budget_bytes=0))
    assert jnp.allclose(out2c, ref2, atol=2e-3, rtol=2e-3), \
        "tiled (h-streamed) f32 path mismatch vs module reference"

    print("KERNEL_OK")
</pallas_src>

<mosaic_0001>
module attributes {stable_mosaic.version = 11 : i64} {
  func.func @_fused_kernel(%arg0: i32, %arg1: memref<16x128xf32, #tpu.memory_space<vmem>>, %arg2: memref<128x128xf32, #tpu.memory_space<vmem>>, %arg3: memref<1x128xf32, #tpu.memory_space<vmem>>, %arg4: memref<128x128xf32, #tpu.memory_space<vmem>>, %arg5: memref<16x128xf32, #tpu.memory_space<vmem>>) attributes {dimension_semantics = [#tpu.dimension_semantics<arbitrary>], iteration_bounds = array<i64: 1>, scalar_prefetch = 0 : i64, scratch_operands = 0 : i64, tpu.core_type = #tpu.core_type<tc>, window_params = [{pipeline_mode = #tpu.pipeline_mode<synchronous>, transform_indices = @transform_0, window_bounds = array<i64: 16, 128>}, {pipeline_mode = #tpu.pipeline_mode<synchronous>, transform_indices = @transform_1, window_bounds = array<i64: 128, 128>}, {pipeline_mode = #tpu.pipeline_mode<synchronous>, transform_indices = @transform_2, window_bounds = array<i64: 1, 128>}, {pipeline_mode = #tpu.pipeline_mode<synchronous>, transform_indices = @transform_3, window_bounds = array<i64: 128, 128>}, {pipeline_mode = #tpu.pipeline_mode<synchronous>, transform_indices = @transform_4, window_bounds = array<i64: 16, 128>}]} {
    %c0 = arith.constant 0 : index
    %c0_0 = arith.constant 0 : index
    %0 = vector.load %arg1[%c0, %c0_0] : memref<16x128xf32, #tpu.memory_space<vmem>>, vector<16x128xf32>
    %c0_1 = arith.constant 0 : index
    %c0_2 = arith.constant 0 : index
    %1 = vector.load %arg2[%c0_1, %c0_2] : memref<128x128xf32, #tpu.memory_space<vmem>>, vector<128x128xf32>
    %cst = arith.constant dense<0.000000e+00> : vector<16x128xf32>
    %2 = tpu.matmul %0, %1, %cst {dimension_numbers = #tpu.dot_dimension_numbers<[1], [1], [0], [0], [0, 0, 1, 0], [], []>, precision = #tpu.contract_precision<fp32>} : vector<16x128xf32>, vector<128x128xf32>, vector<16x128xf32> -> vector<16x128xf32>
    %c0_3 = arith.constant 0 : index
    %c0_4 = arith.constant 0 : index
    %3 = vector.load %arg3[%c0_3, %c0_4] : memref<1x128xf32, #tpu.memory_space<vmem>>, vector<1x128xf32>
    %4 = vector.broadcast %3 : vector<1x128xf32> to vector<16x128xf32>
    %5 = arith.addf %2, %4 : vector<16x128xf32>
    %c0_5 = arith.constant 0 : index
    %c0_6 = arith.constant 0 : index
    %6 = vector.load %arg4[%c0_5, %c0_6] : memref<128x128xf32, #tpu.memory_space<vmem>>, vector<128x128xf32>
    %cst_7 = arith.constant dense<0.000000e+00> : vector<16x128xf32>
    %7 = tpu.matmul %5, %6, %cst_7 {dimension_numbers = #tpu.dot_dimension_numbers<[1], [0], [0], [1], [0, 0, 1, 1], [], []>, precision = #tpu.contract_precision<fp32>} : vector<16x128xf32>, vector<128x128xf32>, vector<16x128xf32> -> vector<16x128xf32>
    %cst_8 = arith.constant dense<0.000000e+00> : vector<16x16xf32>
    %8 = tpu.matmul %7, %5, %cst_8 {dimension_numbers = #tpu.dot_dimension_numbers<[1], [1], [0], [0], [0, 0, 1, 0], [], []>, precision = #tpu.contract_precision<fp32>} : vector<16x128xf32>, vector<16x128xf32>, vector<16x16xf32> -> vector<16x16xf32>
    %cst_9 = arith.constant dense<0xFF800000> : vector<16xf32>
    %9 = vector.multi_reduction <maximumf>, %8, %cst_9 [1] : vector<16x16xf32> to vector<16xf32>
    %10 = vector.shape_cast %9 : vector<16xf32> to vector<16x1xf32>
    %11 = vector.broadcast %10 : vector<16x1xf32> to vector<16x16xf32>
    %12 = arith.subf %8, %11 : vector<16x16xf32>
    %13 = math.exp %12 : vector<16x16xf32>
    %cst_10 = arith.constant dense<0.000000e+00> : vector<16xf32>
    %14 = vector.multi_reduction <add>, %13, %cst_10 [1] : vector<16x16xf32> to vector<16xf32>
    %15 = vector.shape_cast %14 : vector<16xf32> to vector<16x1xf32>
    %cst_11 = arith.constant 1.000000e+00 : f32
    %16 = vector.broadcast %cst_11 : f32 to vector<16x1xf32>
    %17 = arith.divf %16, %15 : vector<16x1xf32>
    %18 = vector.broadcast %17 : vector<16x1xf32> to vector<16x16xf32>
    %19 = arith.mulf %13, %18 : vector<16x16xf32>
    %cst_12 = arith.constant dense<0.000000e+00> : vector<16x128xf32>
    %20 = tpu.matmul %19, %5, %cst_12 {dimension_numbers = #tpu.dot_dimension_numbers<[1], [0], [0], [1], [0, 0, 1, 1], [], []>, precision = #tpu.contract_precision<fp32>} : vector<16x16xf32>, vector<16x128xf32>, vector<16x128xf32> -> vector<16x128xf32>
    %c0_13 = arith.constant 0 : index
    %c0_14 = arith.constant 0 : index
    %21 = vector.load %arg5[%c0_13, %c0_14] : memref<16x128xf32, #tpu.memory_space<vmem>>, vector<16x128xf32>
    tpu.vector_store %arg5[%c0_13, %c0_14], %20 {strides = array<i32>} : memref<16x128xf32, #tpu.memory_space<vmem>>, vector<16x128xf32>,
    return
  }
  func.func @transform_0(%arg0: i32) -> (i32, i32) {
    %c0_i32 = arith.constant 0 : i32
    %c0_i32_0 = arith.constant 0 : i32
    %c0_i32_1 = arith.constant 0 : i32
    return %c0_i32, %c0_i32_0 : i32, i32
  }
  func.func @transform_1(%arg0: i32) -> (i32, i32) {
    %c0_i32 = arith.constant 0 : i32
    %c0_i32_0 = arith.constant 0 : i32
    %c0_i32_1 = arith.constant 0 : i32
    return %c0_i32, %c0_i32_0 : i32, i32
  }
  func.func @transform_2(%arg0: i32) -> (i32, i32) {
    %c0_i32 = arith.constant 0 : i32
    %c0_i32_0 = arith.constant 0 : i32
    %c0_i32_1 = arith.constant 0 : i32
    return %c0_i32, %c0_i32_0 : i32, i32
  }
  func.func @transform_3(%arg0: i32) -> (i32, i32) {
    %c0_i32 = arith.constant 0 : i32
    %c0_i32_0 = arith.constant 0 : i32
    %c0_i32_1 = arith.constant 0 : i32
    return %c0_i32, %c0_i32_0 : i32, i32
  }
  func.func @transform_4(%arg0: i32) -> (i32, i32) {
    %c0_i32 = arith.constant 0 : i32
    %c0_i32_0 = arith.constant 0 : i32
    %c0_i32_1 = arith.constant 0 : i32
    return %c0_i32, %c0_i32_0 : i32, i32
  }
}

</mosaic_0001>

<llo_original>
// kernel: tpu_custom_call.1
$region0: #{tpu_custom_call.1}
  #allocation0 [shape = 'u32[]', space=smem, size = 0x4, offset = 0x4, fixed_abs, tag = 'smem constant byte address 0x4 - core index']
  #allocation1 [shape = 'u32[144,128]{1,0:T(1,128)}', space=vmem, size = 0x12000, scoped, tag = 'internal scratch']
  %s0 = inlined_call_operand.hbm [shape: f32[16,128], index: 0, kind: input, shape index: {}]
  %s1 = inlined_call_operand.hbm [shape: f32[128,128], index: 1, kind: input, shape index: {}]
  %s2 = inlined_call_operand.vmem [shape: f32[1,128], index: 2, kind: input, shape index: {}]
  %s3 = inlined_call_operand.hbm [shape: f32[128,128], index: 3, kind: input, shape index: {}]
  %s4 = inlined_call_operand.hbm [shape: f32[16,128], index: 4, kind: output, shape index: {}]
  %s5 = sld [smem:[#allocation0]]
  $region38: #{tpu_custom_call.1} parent=0
    _
  %s7 = ssub.s32 1, %s5
  %s8 = scalar_select 0, %s7, %s5
  $region1: #{tpu_custom_call.1} parent=0
    #allocation2 [shape = 'u8[8192]{0}', space=vmem, size = 0x2000, scoped, tag = 'input window, operand 0, single buffered']
    #allocation3 [shape = 's32[1]{0}', space=sflag, size = 0x4, scoped, tag = 'scoped memory for tpu_custom_call.1']
    #allocation4 [shape = 's32[1]{0}', space=sflag, size = 0x4, scoped, tag = 'scoped memory for tpu_custom_call.1']
    #allocation5 [shape = 'u8[65536]{0}', space=vmem, size = 0x10000, scoped, tag = 'input window, operand 1, single buffered']
    #allocation6 [shape = 's32[1]{0}', space=sflag, size = 0x4, scoped, tag = 'scoped memory for tpu_custom_call.1']
    #allocation7 [shape = 'u8[65536]{0}', space=vmem, size = 0x10000, scoped, tag = 'input window, operand 3, single buffered']
    #allocation8 [shape = 'u8[8192]{0}', space=vmem, size = 0x2000, scoped, tag = 'output window, operand 0, single buffered']
    %9 = vsyncpa [#allocation3], 0
    %10 = vsyncpa [#allocation6], 0
    %11 = vsyncpa [#allocation4], 0
    // Predicated region
    $region2: #{tpu_custom_call.1} parent=1 // pred_check
      _
    $region3: #{tpu_custom_call.1} parent=1 // pred_check_branch
      %13 = sbr.rel (0) target = $region5
    $region4: #{tpu_custom_call.1} parent=1 // pred_region
      %s15 = ssub.s32 256, 256
      %16 = vsyncadd [#allocation3], %s15
      %s17 = sshll.u32 [#allocation2], 4
      %s18 = int_to_ptr.vmem [resolvable:$true] %s17
      %23 = dma.hbm_to_vmem [thread:$0]  %s0, 256, %s18, [#allocation3], 128, 128, 8
    $region5: #{tpu_custom_call.1} parent=1 // pred_fallthru
      _
    // Predicated region
    $region6: #{tpu_custom_call.1} parent=1 // pred_check
      _
    $region7: #{tpu_custom_call.1} parent=1 // pred_check_branch
      %25 = sbr.rel (0) target = $region9
    $region8: #{tpu_custom_call.1} parent=1 // pred_region
      %s27 = ssub.s32 2048, 2048
      %28 = vsyncadd [#allocation6], %s27
      %s29 = sshll.u32 [#allocation5], 4
      %s30 = int_to_ptr.vmem [resolvable:$true] %s29
      %35 = dma.hbm_to_vmem [thread:$0]  %s1, 2048, %s30, [#allocation6], 128, 128, 8
    $region9: #{tpu_custom_call.1} parent=1 // pred_fallthru
      _
    // Predicated region
    $region10: #{tpu_custom_call.1} parent=1 // pred_check
      _
    $region11: #{tpu_custom_call.1} parent=1 // pred_check_branch
      %37 = sbr.rel (0) target = $region13
    $region12: #{tpu_custom_call.1} parent=1 // pred_region
      _
    $region13: #{tpu_custom_call.1} parent=1 // pred_fallthru
      _
    // Predicated region
    $region14: #{tpu_custom_call.1} parent=1 // pred_check
      _
    $region15: #{tpu_custom_call.1} parent=1 // pred_check_branch
      %39 = sbr.rel (0) target = $region17
    $region16: #{tpu_custom_call.1} parent=1 // pred_region
      %s41 = ssub.s32 2048, 2048
      %42 = vsyncadd [#allocation6], %s41
      %s43 = sshll.u32 [#allocation7], 4
      %s44 = int_to_ptr.vmem [resolvable:$true] %s43
      %49 = dma.hbm_to_vmem [thread:$0]  %s3, 2048, %s44, [#allocation6], 128, 128, 8
    $region17: #{tpu_custom_call.1} parent=1 // pred_fallthru
      _
    // Predicated region
    $region18: #{tpu_custom_call.1} parent=1 // pred_check
      _
    $region19: #{tpu_custom_call.1} parent=1 // pred_check_branch
      %51 = sbr.rel (0) target = $region21
    $region20: #{tpu_custom_call.1} parent=1 // pred_region
      %52 = dma.done [#allocation3], 256
    $region21: #{tpu_custom_call.1} parent=1 // pred_fallthru
      _
    // Predicated region
    $region22: #{tpu_custom_call.1} parent=1 // pred_check
      _
    $region23: #{tpu_custom_call.1} parent=1 // pred_check_branch
      %54 = sbr.rel (0) target = $region25
    $region24: #{tpu_custom_call.1} parent=1 // pred_region
      %55 = dma.done [#allocation6], 2048
    $region25: #{tpu_custom_call.1} parent=1 // pred_fallthru
      _
    // Predicated region
    $region26: #{tpu_custom_call.1} parent=1 // pred_check
      _
    $region27: #{tpu_custom_call.1} parent=1 // pred_check_branch
      %57 = sbr.rel (0) target = $region29
    $region28: #{tpu_custom_call.1} parent=1 // pred_region
      %58 = dma.done [#allocation6], 2048
    $region29: #{tpu_custom_call.1} parent=1 // pred_fallthru
      _
    %v59 = vld [vmem:[#allocation2] sm:$0xff]
    %v60 = vld [vmem:[#allocation2 + $0x8] sm:$0xff]
    %v61 = vld [vmem:[#allocation5] sm:$0xff]
    %v62 = vld [vmem:[#allocation5 + $0x8] sm:$0xff]
    %v63 = vld [vmem:[#allocation5 + $0x10] sm:$0xff]
    %v64 = vld [vmem:[#allocation5 + $0x18] sm:$0xff]
    %v65 = vld [vmem:[#allocation5 + $0x20] sm:$0xff]
    %v66 = vld [vmem:[#allocation5 + $0x28] sm:$0xff]
    %v67 = vld [vmem:[#allocation5 + $0x30] sm:$0xff]
    %v68 = vld [vmem:[#allocation5 + $0x38] sm:$0xff]
    %v69 = vld [vmem:[#allocation5 + $0x40] sm:$0xff]
    %v70 = vld [vmem:[#allocation5 + $0x48] sm:$0xff]
    %v71 = vld [vmem:[#allocation5 + $0x50] sm:$0xff]
    %v72 = vld [vmem:[#allocation5 + $0x58] sm:$0xff]
    %v73 = vld [vmem:[#allocation5 + $0x60] sm:$0xff]
    %v74 = vld [vmem:[#allocation5 + $0x68] sm:$0xff]
    %v75 = vld [vmem:[#allocation5 + $0x70] sm:$0xff]
    %v76 = vld [vmem:[#allocation5 + $0x78] sm:$0xff]
    %v77 = vld [vmem:[%s2] sm:$0x1]
    %v79 = vlaneseq
    %v80 = vshrl.u32 %v79, 7
    %v81 = vsub.s32 0, %v80
    %v82 = vrot.slane %v77, %v81
    %84 = vmatprep.subr.mxu0 0.0
    %v85 = vand.u32 %v61, 4294901760
    %86 = vmatpush1.xpose.msra.mxu0 %v85
    %87 = vmatprep.subr.mxu0 0.0
    %v88 = vand.u32 %v62, 4294901760
    %89 = vmatpush1.xpose.msra.mxu0 %v88
    %90 = vmatprep.subr.mxu0 0.0
    %v91 = vand.u32 %v63, 4294901760
    %92 = vmatpush1.xpose.msra.mxu0 %v91
    %93 = vmatprep.subr.mxu0 0.0
    %v94 = vand.u32 %v64, 4294901760
    %95 = vmatpush1.xpose.msra.mxu0 %v94
    %96 = vmatprep.subr.mxu0 0.0
    %v97 = vand.u32 %v65, 4294901760
    %98 = vmatpush1.xpose.msra.mxu0 %v97
    %99 = vmatprep.subr.mxu0 0.0
    %v100 = vand.u32 %v66, 4294901760
    %101 = vmatpush1.xpose.msra.mxu0 %v100
    %102 = vmatprep.subr.mxu0 0.0
    %v103 = vand.u32 %v67, 4294901760
    %104 = vmatpush1.xpose.msra.mxu0 %v103
    %105 = vmatprep.subr.mxu0 0.0
    %v106 = vand.u32 %v68, 4294901760
    %107 = vmatpush1.xpose.msra.mxu0 %v106
    %108 = vmatprep.subr.mxu0 0.0
    %v109 = vand.u32 %v69, 4294901760
    %110 = vmatpush1.xpose.msra.mxu0 %v109
    %111 = vmatprep.subr.mxu0 0.0
    %v112 = vand.u32 %v70, 4294901760
    %113 = vmatpush1.xpose.msra.mxu0 %v112
    %114 = vmatprep.subr.mxu0 0.0
    %v115 = vand.u32 %v71, 4294901760
    %116 = vmatpush1.xpose.msra.mxu0 %v115
    %117 = vmatprep.subr.mxu0 0.0
    %v118 = vand.u32 %v72, 4294901760
    %119 = vmatpush1.xpose.msra.mxu0 %v118
    %120 = vmatprep.subr.mxu0 0.0
    %v121 = vand.u32 %v73, 4294901760
    %122 = vmatpush1.xpose.msra.mxu0 %v121
    %123 = vmatprep.subr.mxu0 0.0
    %v124 = vand.u32 %v74, 4294901760
    %125 = vmatpush1.xpose.msra.mxu0 %v124
    %126 = vmatprep.subr.mxu0 0.0
    %v127 = vand.u32 %v75, 4294901760
    %128 = vmatpush1.xpose.msra.mxu0 %v127
    %129 = vmatprep.subr.mxu0 0.0
    %v130 = vand.u32 %v76, 4294901760
    %131 = vmatpush1.xpose.msra.mxu0 %v130
    %132 = vmatprep.subr.mxu0 0.0
    %133 = vmatpush1.xpose.msra.mxu0 0.0
    %134 = vmatprep.subr.mxu0 0.0
    %135 = vmatpush1.xpose.msra.mxu0 0.0
    %136 = vmatprep.subr.mxu0 0.0
    %137 = vmatpush1.xpose.msra.mxu0 0.0
    %138 = vmatprep.subr.mxu0 0.0
    %139 = vmatpush1.xpose.msra.mxu0 0.0
    %140 = vmatprep.subr.mxu0 0.0
    %141 = vmatpush1.xpose.msra.mxu0 0.0
    %142 = vmatprep.subr.mxu0 0.0
    %143 = vmatpush1.xpose.msra.mxu0 0.0
    %144 = vmatprep.subr.mxu0 0.0
    %145 = vmatpush1.xpose.msra.mxu0 0.0
    %146 = vmatprep.subr.mxu0 0.0
    %147 = vmatpush1.xpose.msra.mxu0 0.0
    %148 = vmatprep.subr.mxu0 0.0
    %149 = vmatpush1.xpose.msra.mxu0 0.0
    %150 = vmatprep.subr.mxu0 0.0
    %151 = vmatpush1.xpose.msra.mxu0 0.0
    %152 = vmatprep.subr.mxu0 0.0
    %153 = vmatpush1.xpose.msra.mxu0 0.0
    %154 = vmatprep.subr.mxu0 0.0
    %155 = vmatpush1.xpose.msra.mxu0 0.0
    %156 = vmatprep.subr.mxu0 0.0
    %157 = vmatpush1.xpose.msra.mxu0 0.0
    %158 = vmatprep.subr.mxu0 0.0
    %159 = vmatpush1.xpose.msra.mxu0 0.0
    %160 = vmatprep.subr.mxu0 0.0
    %161 = vmatpush1.xpose.msra.mxu0 0.0
    %162 = vmatprep.subr.mxu0 0.0
    %163 = vmatpush1.xpose.msra.mxu0 0.0
    %164 = vmatprep.mubr.f32.mxu0 0.0
    %v165 = vand.u32 %v59, 4294901760
    %v166 = vsub.f32 %v59, %v165
    %v167 = vand.u32 %v166, 4294901760
    %v168 = vsub.f32 %v166, %v167
    %v169 = vand.u32 %v168, 4294901760
    %170 = vmatmul.mubr.f32.gmra.mrb[0].mxu0 %v169
    %v171 = vpop.f32.mrb[0].mxu0
    %v172 = vadd.f32 %v82, %v171
    %v173 = vpop.f32.mrb[0].mxu0
    %174 = vmatprep.mubr.f32.mxu0 0.0
    %v175 = vand.u32 %v60, 4294901760
    %v176 = vsub.f32 %v60, %v175
    %v177 = vand.u32 %v176, 4294901760
    %v178 = vsub.f32 %v176, %v177
    %v179 = vand.u32 %v178, 4294901760
    %180 = vmatmul.mubr.f32.gmra.mrb[0].mxu0 %v179
    %v181 = vpop.f32.mrb[0].mxu0
    %v182 = vadd.f32 %v82, %v181
    %v183 = vpop.f32.mrb[0].mxu0
    %184 = vdwg.mxu0
    %185 = vmatprep.subr.mxu0 0.0
    %v186 = vand.u32 %v61, 4294901760
    %v187 = vsub.f32 %v61, %v186
    %v188 = vand.u32 %v187, 4294901760
    %v189 = vsub.f32 %v187, %v188
    %v190 = vand.u32 %v189, 4294901760
    %191 = vmatpush1.xpose.msra.mxu0 %v190
    %192 = vmatprep.subr.mxu0 0.0
    %v193 = vand.u32 %v62, 4294901760
    %v194 = vsub.f32 %v62, %v193
    %v195 = vand.u32 %v194, 4294901760
    %v196 = vsub.f32 %v194, %v195
    %v197 = vand.u32 %v196, 4294901760
    %198 = vmatpush1.xpose.msra.mxu0 %v197
    %199 = vmatprep.subr.mxu0 0.0
    %v200 = vand.u32 %v63, 4294901760
    %v201 = vsub.f32 %v63, %v200
    %v202 = vand.u32 %v201, 4294901760
    %v203 = vsub.f32 %v201, %v202
    %v204 = vand.u32 %v203, 4294901760
    %205 = vmatpush1.xpose.msra.mxu0 %v204
    %206 = vmatprep.subr.mxu0 0.0
    %v207 = vand.u32 %v64, 4294901760
    %v208 = vsub.f32 %v64, %v207
    %v209 = vand.u32 %v208, 4294901760
    %v210 = vsub.f32 %v208, %v209
    %v211 = vand.u32 %v210, 4294901760
    %212 = vmatpush1.xpose.msra.mxu0 %v211
    %213 = vmatprep.subr.mxu0 0.0
    %v214 = vand.u32 %v65, 4294901760
    %v215 = vsub.f32 %v65, %v214
    %v216 = vand.u32 %v215, 4294901760
    %v217 = vsub.f32 %v215, %v216
    %v218 = vand.u32 %v217, 4294901760
    %219 = vmatpush1.xpose.msra.mxu0 %v218
    %220 = vmatprep.subr.mxu0 0.0
    %v221 = vand.u32 %v66, 4294901760
    %v222 = vsub.f32 %v66, %v221
    %v223 = vand.u32 %v222, 4294901760
    %v224 = vsub.f32 %v222, %v223
    %v225 = vand.u32 %v224, 4294901760
    %226 = vmatpush1.xpose.msra.mxu0 %v225
    %227 = vmatprep.subr.mxu0 0.0
    %v228 = vand.u32 %v67, 4294901760
    %v229 = vsub.f32 %v67, %v228
    %v230 = vand.u32 %v229, 4294901760
    %v231 = vsub.f32 %v229, %v230
    %v232 = vand.u32 %v231, 4294901760
    %233 = vmatpush1.xpose.msra.mxu0 %v232
    %234 = vmatprep.subr.mxu0 0.0
    %v235 = vand.u32 %v68, 4294901760
    %v236 = vsub.f32 %v68, %v235
    %v237 = vand.u32 %v236, 4294901760
    %v238 = vsub.f32 %v236, %v237
    %v239 = vand.u32 %v238, 4294901760
    %240 = vmatpush1.xpose.msra.mxu0 %v239
    %241 = vmatprep.subr.mxu0 0.0
    %v242 = vand.u32 %v69, 4294901760
    %v243 = vsub.f32 %v69, %v242
    %v244 = vand.u32 %v243, 4294901760
    %v245 = vsub.f32 %v243, %v244
    %v246 = vand.u32 %v245, 4294901760
    %247 = vmatpush1.xpose.msra.mxu0 %v246
    %248 = vmatprep.subr.mxu0 0.0
    %v249 = vand.u32 %v70, 4294901760
    %v250 = vsub.f32 %v70, %v249
    %v251 = vand.u32 %v250, 4294901760
    %v252 = vsub.f32 %v250, %v251
    %v253 = vand.u32 %v252, 4294901760
    %254 = vmatpush1.xpose.msra.mxu0 %v253
    %255 = vmatprep.subr.mxu0 0.0
    %v256 = vand.u32 %v71, 4294901760
    %v257 = vsub.f32 %v71, %v256
    %v258 = vand.u32 %v257, 4294901760
    %v259 = vsub.f32 %v257, %v258
    %v260 = vand.u32 %v259, 4294901760
    %261 = vmatpush1.xpose.msra.mxu0 %v260
    %262 = vmatprep.subr.mxu0 0.0
    %v263 = vand.u32 %v72, 4294901760
    %v264 = vsub.f32 %v72, %v263
    %v265 = vand.u32 %v264, 4294901760
    %v266 = vsub.f32 %v264, %v265
    %v267 = vand.u32 %v266, 4294901760
    %268 = vmatpush1.xpose.msra.mxu0 %v267
    %269 = vmatprep.subr.mxu0 0.0
    %v270 = vand.u32 %v73, 4294901760
    %v271 = vsub.f32 %v73, %v270
    %v272 = vand.u32 %v271, 4294901760
    %v273 = vsub.f32 %v271, %v272
    %v274 = vand.u32 %v273, 4294901760
    %275 = vmatpush1.xpose.msra.mxu0 %v274
    %276 = vmatprep.subr.mxu0 0.0
    %v277 = vand.u32 %v74, 4294901760
    %v278 = vsub.f32 %v74, %v277
    %v279 = vand.u32 %v278, 4294901760
    %v280 = vsub.f32 %v278, %v279
    %v281 = vand.u32 %v280, 4294901760
    %282 = vmatpush1.xpose.msra.mxu0 %v281
    %283 = vmatprep.subr.mxu0 0.0
    %v284 = vand.u32 %v75, 4294901760
    %v285 = vsub.f32 %v75, %v284
    %v286 = vand.u32 %v285, 4294901760
    %v287 = vsub.f32 %v285, %v286
    %v288 = vand.u32 %v287, 4294901760
    %289 = vmatpush1.xpose.msra.mxu0 %v288
    %290 = vmatprep.subr.mxu0 0.0
    %v291 = vand.u32 %v76, 4294901760
    %v292 = vsub.f32 %v76, %v291
    %v293 = vand.u32 %v292, 4294901760
    %v294 = vsub.f32 %v292, %v293
    %v295 = vand.u32 %v294, 4294901760
    %296 = vmatpush1.xpose.msra.mxu0 %v295
    %297 = vmatprep.subr.mxu0 0.0
    %298 = vmatpush1.xpose.msra.mxu0 0.0
    %299 = vmatprep.subr.mxu0 0.0
    %300 = vmatpush1.xpose.msra.mxu0 0.0
    %301 = vmatprep.subr.mxu0 0.0
    %302 = vmatpush1.xpose.msra.mxu0 0.0
    %303 = vmatprep.subr.mxu0 0.0
    %304 = vmatpush1.xpose.msra.mxu0 0.0
    %305 = vmatprep.subr.mxu0 0.0
    %306 = vmatpush1.xpose.msra.mxu0 0.0
    %307 = vmatprep.subr.mxu0 0.0
    %308 = vmatpush1.xpose.msra.mxu0 0.0
    %309 = vmatprep.subr.mxu0 0.0
    %310 = vmatpush1.xpose.msra.mxu0 0.0
    %311 = vmatprep.subr.mxu0 0.0
    %312 = vmatpush1.xpose.msra.mxu0 0.0
    %313 = vmatprep.subr.mxu0 0.0
    %314 = vmatpush1.xpose.msra.mxu0 0.0
    %315 = vmatprep.subr.mxu0 0.0
    %316 = vmatpush1.xpose.msra.mxu0 0.0
    %317 = vmatprep.subr.mxu0 0.0
    %318 = vmatpush1.xpose.msra.mxu0 0.0
    %319 = vmatprep.subr.mxu0 0.0
    %320 = vmatpush1.xpose.msra.mxu0 0.0
    %321 = vmatprep.subr.mxu0 0.0
    %322 = vmatpush1.xpose.msra.mxu0 0.0
    %323 = vmatprep.subr.mxu0 0.0
    %324 = vmatpush1.xpose.msra.mxu0 0.0
    %325 = vmatprep.subr.mxu0 0.0
    %326 = vmatpush1.xpose.msra.mxu0 0.0
    %327 = vmatprep.subr.mxu0 0.0
    %328 = vmatpush1.xpose.msra.mxu0 0.0
    %329 = vmatprep.mubr.f32.mxu0 0.0
    %v330 = vand.u32 %v59, 4294901760
    %331 = vmatmul.mubr.f32.gmra.mrb[0].mxu0 %v330
    %v332 = vpop.f32.mrb[0].mxu0
    %v333 = vadd.f32 %v172, %v332
    %v334 = vpop.f32.mrb[0].mxu0
    %335 = vmatprep.mubr.f32.mxu0 0.0
    %v336 = vand.u32 %v60, 4294901760
    %337 = vmatmul.mubr.f32.gmra.mrb[0].mxu0 %v336
    %v338 = vpop.f32.mrb[0].mxu0
    %v339 = vadd.f32 %v182, %v338
    %v340 = vpop.f32.mrb[0].mxu0
    %341 = vdwg.mxu0
    %342 = vmatprep.subr.mxu0 0.0
    %v343 = vand.u32 %v61, 4294901760
    %v344 = vsub.f32 %v61, %v343
    %345 = vmatpush1.xpose.msra.mxu0 %v344
    %346 = vmatprep.subr.mxu0 0.0
    %v347 = vand.u32 %v62, 4294901760
    %v348 = vsub.f32 %v62, %v347
    %349 = vmatpush1.xpose.msra.mxu0 %v348
    %350 = vmatprep.subr.mxu0 0.0
    %v351 = vand.u32 %v63, 4294901760
    %v352 = vsub.f32 %v63, %v351
    %353 = vmatpush1.xpose.msra.mxu0 %v352
    %354 = vmatprep.subr.mxu0 0.0
    %v355 = vand.u32 %v64, 4294901760
    %v356 = vsub.f32 %v64, %v355
    %357 = vmatpush1.xpose.msra.mxu0 %v356
    %358 = vmatprep.subr.mxu0 0.0
    %v359 = vand.u32 %v65, 4294901760
    %v360 = vsub.f32 %v65, %v359
    %361 = vmatpush1.xpose.msra.mxu0 %v360
    %362 = vmatprep.subr.mxu0 0.0
    %v363 = vand.u32 %v66, 4294901760
    %v364 = vsub.f32 %v66, %v363
    %365 = vmatpush1.xpose.msra.mxu0 %v364
    %366 = vmatprep.subr.mxu0 0.0
    %v367 = vand.u32 %v67, 4294901760
    %v368 = vsub.f32 %v67, %v367
    %369 = vmatpush1.xpose.msra.mxu0 %v368
    %370 = vmatprep.subr.mxu0 0.0
    %v371 = vand.u32 %v68, 4294901760
    %v372 = vsub.f32 %v68, %v371
    %373 = vmatpush1.xpose.msra.mxu0 %v372
    %374 = vmatprep.subr.mxu0 0.0
    %v375 = vand.u32 %v69, 4294901760
    %v376 = vsub.f32 %v69, %v375
    %377 = vmatpush1.xpose.msra.mxu0 %v376
    %378 = vmatprep.subr.mxu0 0.0
    %v379 = vand.u32 %v70, 4294901760
    %v380 = vsub.f32 %v70, %v379
    %381 = vmatpush1.xpose.msra.mxu0 %v380
    %382 = vmatprep.subr.mxu0 0.0
    %v383 = vand.u32 %v71, 4294901760
    %v384 = vsub.f32 %v71, %v383
    %385 = vmatpush1.xpose.msra.mxu0 %v384
    %386 = vmatprep.subr.mxu0 0.0
    %v387 = vand.u32 %v72, 4294901760
    %v388 = vsub.f32 %v72, %v387
    %389 = vmatpush1.xpose.msra.mxu0 %v388
    %390 = vmatprep.subr.mxu0 0.0
    %v391 = vand.u32 %v73, 4294901760
    %v392 = vsub.f32 %v73, %v391
    %393 = vmatpush1.xpose.msra.mxu0 %v392
    %394 = vmatprep.subr.mxu0 0.0
    %v395 = vand.u32 %v74, 4294901760
    %v396 = vsub.f32 %v74, %v395
    %397 = vmatpush1.xpose.msra.mxu0 %v396
    %398 = vmatprep.subr.mxu0 0.0
    %v399 = vand.u32 %v75, 4294901760
    %v400 = vsub.f32 %v75, %v399
    %401 = vmatpush1.xpose.msra.mxu0 %v400
    %402 = vmatprep.subr.mxu0 0.0
    %v403 = vand.u32 %v76, 4294901760
    %v404 = vsub.f32 %v76, %v403
    %405 = vmatpush1.xpose.msra.mxu0 %v404
    %406 = vmatprep.subr.mxu0 0.0
    %407 = vmatpush1.xpose.msra.mxu0 0.0
    %408 = vmatprep.subr.mxu0 0.0
    %409 = vmatpush1.xpose.msra.mxu0 0.0
    %410 = vmatprep.subr.mxu0 0.0
    %411 = vmatpush1.xpose.msra.mxu0 0.0
    %412 = vmatprep.subr.mxu0 0.0
    %413 = vmatpush1.xpose.msra.mxu0 0.0
    %414 = vmatprep.subr.mxu0 0.0
    %415 = vmatpush1.xpose.msra.mxu0 0.0
    %416 = vmatprep.subr.mxu0 0.0
    %417 = vmatpush1.xpose.msra.mxu0 0.0
    %418 = vmatprep.subr.mxu0 0.0
    %419 = vmatpush1.xpose.msra.mxu0 0.0
    %420 = vmatprep.subr.mxu0 0.0
    %421 = vmatpush1.xpose.msra.mxu0 0.0
    %422 = vmatprep.subr.mxu0 0.0
    %423 = vmatpush1.xpose.msra.mxu0 0.0
    %424 = vmatprep.subr.mxu0 0.0
    %425 = vmatpush1.xpose.msra.mxu0 0.0
    %426 = vmatprep.subr.mxu0 0.0
    %427 = vmatpush1.xpose.msra.mxu0 0.0
    %428 = vmatprep.subr.mxu0 0.0
    %429 = vmatpush1.xpose.msra.mxu0 0.0
    %430 = vmatprep.subr.mxu0 0.0
    %431 = vmatpush1.xpose.msra.mxu0 0.0
    %432 = vmatprep.subr.mxu0 0.0
    %433 = vmatpush1.xpose.msra.mxu0 0.0
    %434 = vmatprep.subr.mxu0 0.0
    %435 = vmatpush1.xpose.msra.mxu0 0.0
    %436 = vmatprep.subr.mxu0 0.0
    %437 = vmatpush1.xpose.msra.mxu0 0.0
    %438 = vmatprep.mubr.f32.mxu0 0.0
    %v439 = vand.u32 %v59, 4294901760
    %v440 = vsub.f32 %v59, %v439
    %441 = vmatmul.mubr.f32.gmra.mrb[0].mxu0 %v440
    %v442 = vpop.f32.mrb[0].mxu0
    %v443 = vadd.f32 %v333, %v442
    %v444 = vpop.f32.mrb[0].mxu0
    %445 = vmatprep.mubr.f32.mxu0 0.0
    %v446 = vand.u32 %v60, 4294901760
    %v447 = vsub.f32 %v60, %v446
    %448 = vmatmul.mubr.f32.gmra.mrb[0].mxu0 %v447
    %v449 = vpop.f32.mrb[0].mxu0
    %v450 = vadd.f32 %v339, %v449
    %v451 = vpop.f32.mrb[0].mxu0
    %452 = vdwg.mxu0
    %453 = vmatprep.subr.mxu0 0.0
    %v454 = vand.u32 %v61, 4294901760
    %455 = vmatpush1.xpose.msra.mxu0 %v454
    %456 = vmatprep.subr.mxu0 0.0
    %v457 = vand.u32 %v62, 4294901760
    %458 = vmatpush1.xpose.msra.mxu0 %v457
    %459 = vmatprep.subr.mxu0 0.0
    %v460 = vand.u32 %v63, 4294901760
    %461 = vmatpush1.xpose.msra.mxu0 %v460
    %462 = vmatprep.subr.mxu0 0.0
    %v463 = vand.u32 %v64, 4294901760
    %464 = vmatpush1.xpose.msra.mxu0 %v463
    %465 = vmatprep.subr.mxu0 0.0
    %v466 = vand.u32 %v65, 4294901760
    %467 = vmatpush1.xpose.msra.mxu0 %v466
    %468 = vmatprep.subr.mxu0 0.0
    %v469 = vand.u32 %v66, 4294901760
    %470 = vmatpush1.xpose.msra.mxu0 %v469
    %471 = vmatprep.subr.mxu0 0.0
    %v472 = vand.u32 %v67, 4294901760
    %473 = vmatpush1.xpose.msra.mxu0 %v472
    %474 = vmatprep.subr.mxu0 0.0
    %v475 = vand.u32 %v68, 4294901760
    %476 = vmatpush1.xpose.msra.mxu0 %v475
    %477 = vmatprep.subr.mxu0 0.0
    %v478 = vand.u32 %v69, 4294901760
    %479 = vmatpush1.xpose.msra.mxu0 %v478
    %480 = vmatprep.subr.mxu0 0.0
    %v481 = vand.u32 %v70, 4294901760
    %482 = vmatpush1.xpose.msra.mxu0 %v481
    %483 = vmatprep.subr.mxu0 0.0
    %v484 = vand.u32 %v71, 4294901760
    %485 = vmatpush1.xpose.msra.mxu0 %v484
    %486 = vmatprep.subr.mxu0 0.0
    %v487 = vand.u32 %v72, 4294901760
    %488 = vmatpush1.xpose.msra.mxu0 %v487
    %489 = vmatprep.subr.mxu0 0.0
    %v490 = vand.u32 %v73, 4294901760
    %491 = vmatpush1.xpose.msra.mxu0 %v490
    %492 = vmatprep.subr.mxu0 0.0
    %v493 = vand.u32 %v74, 4294901760
    %494 = vmatpush1.xpose.msra.mxu0 %v493
    %495 = vmatprep.subr.mxu0 0.0
    %v496 = vand.u32 %v75, 4294901760
    %497 = vmatpush1.xpose.msra.mxu0 %v496
    %498 = vmatprep.subr.mxu0 0.0
    %v499 = vand.u32 %v76, 4294901760
    %500 = vmatpush1.xpose.msra.mxu0 %v499
    %501 = vmatprep.subr.mxu0 0.0
    %502 = vmatpush1.xpose.msra.mxu0 0.0
    %503 = vmatprep.subr.mxu0 0.0
    %504 = vmatpush1.xpose.msra.mxu0 0.0
    %505 = vmatprep.subr.mxu0 0.0
    %506 = vmatpush1.xpose.msra.mxu0 0.0
    %507 = vmatprep.subr.mxu0 0.0
    %508 = vmatpush1.xpose.msra.mxu0 0.0
    %509 = vmatprep.subr.mxu0 0.0
    %510 = vmatpush1.xpose.msra.mxu0 0.0
    %511 = vmatprep.subr.mxu0 0.0
    %512 = vmatpush1.xpose.msra.mxu0 0.0
    %513 = vmatprep.subr.mxu0 0.0
    %514 = vmatpush1.xpose.msra.mxu0 0.0
    %515 = vmatprep.subr.mxu0 0.0
    %516 = vmatpush1.xpose.msra.mxu0 0.0
    %517 = vmatprep.subr.mxu0 0.0
    %518 = vmatpush1.xpose.msra.mxu0 0.0
    %519 = vmatprep.subr.mxu0 0.0
    %520 = vmatpush1.xpose.msra.mxu0 0.0
    %521 = vmatprep.subr.mxu0 0.0
    %522 = vmatpush1.xpose.msra.mxu0 0.0
    %523 = vmatprep.subr.mxu0 0.0
    %524 = vmatpush1.xpose.msra.mxu0 0.0
    %525 = vmatprep.subr.mxu0 0.0
    %526 = vmatpush1.xpose.msra.mxu0 0.0
    %527 = vmatprep.subr.mxu0 0.0
    %528 = vmatpush1.xpose.msra.mxu0 0.0
    %529 = vmatprep.subr.mxu0 0.0
    %530 = vmatpush1.xpose.msra.mxu0 0.0
    %531 = vmatprep.subr.mxu0 0.0
    %532 = vmatpush1.xpose.msra.mxu0 0.0
    %533 = vmatprep.mubr.f32.mxu0 0.0
    %v534 = vand.u32 %v59, 4294901760
    %v535 = vsub.f32 %v59, %v534
    %v536 = vand.u32 %v535, 4294901760
    %537 = vmatmul.mubr.f32.gmra.mrb[0].mxu0 %v536
    %v538 = vpop.f32.mrb[0].mxu0
    %v539 = vadd.f32 %v443, %v538
    %v540 = vpop.f32.mrb[0].mxu0
    %541 = vmatprep.mubr.f32.mxu0 0.0
    %v542 = vand.u32 %v60, 4294901760
    %v543 = vsub.f32 %v60, %v542
    %v544 = vand.u32 %v543, 4294901760
    %545 = vmatmul.mubr.f32.gmra.mrb[0].mxu0 %v544
    %v546 = vpop.f32.mrb[0].mxu0
    %v547 = vadd.f32 %v450, %v546
    %v548 = vpop.f32.mrb[0].mxu0
    %549 = vdwg.mxu0
    %550 = vmatprep.subr.mxu0 0.0
    %v551 = vand.u32 %v61, 4294901760
    %v552 = vsub.f32 %v61, %v551
    %v553 = vand.u32 %v552, 4294901760
    %554 = vmatpush1.xpose.msra.mxu0 %v553
    %555 = vmatprep.subr.mxu0 0.0
    %v556 = vand.u32 %v62, 4294901760
    %v557 = vsub.f32 %v62, %v556
    %v558 = vand.u32 %v557, 4294901760
    %559 = vmatpush1.xpose.msra.mxu0 %v558
    %560 = vmatprep.subr.mxu0 0.0
    %v561 = vand.u32 %v63, 4294901760
    %v562 = vsub.f32 %v63, %v561
    %v563 = vand.u32 %v562, 4294901760
    %564 = vmatpush1.xpose.msra.mxu0 %v563
    %565 = vmatprep.subr.mxu0 0.0
    %v566 = vand.u32 %v64, 4294901760
    %v567 = vsub.f32 %v64, %v566
    %v568 = vand.u32 %v567, 4294901760
    %569 = vmatpush1.xpose.msra.mxu0 %v568
    %570 = vmatprep.subr.mxu0 0.0
    %v571 = vand.u32 %v65, 4294901760
    %v572 = vsub.f32 %v65, %v571
    %v573 = vand.u32 %v572, 4294901760
    %574 = vmatpush1.xpose.msra.mxu0 %v573
    %575 = vmatprep.subr.mxu0 0.0
    %v576 = vand.u32 %v66, 4294901760
    %v577 = vsub.f32 %v66, %v576
    %v578 = vand.u32 %v577, 4294901760
    %579 = vmatpush1.xpose.msra.mxu0 %v578
    %580 = vmatprep.subr.mxu0 0.0
    %v581 = vand.u32 %v67, 4294901760
    %v582 = vsub.f32 %v67, %v581
    %v583 = vand.u32 %v582, 4294901760
    %584 = vmatpush1.xpose.msra.mxu0 %v583
    %585 = vmatprep.subr.mxu0 0.0
    %v586 = vand.u32 %v68, 4294901760
    %v587 = vsub.f32 %v68, %v586
    %v588 = vand.u32 %v587, 4294901760
    %589 = vmatpush1.xpose.msra.mxu0 %v588
    %590 = vmatprep.subr.mxu0 0.0
    %v591 = vand.u32 %v69, 4294901760
    %v592 = vsub.f32 %v69, %v591
    %v593 = vand.u32 %v592, 4294901760
    %594 = vmatpush1.xpose.msra.mxu0 %v593
    %595 = vmatprep.subr.mxu0 0.0
    %v596 = vand.u32 %v70, 4294901760
    %v597 = vsub.f32 %v70, %v596
    %v598 = vand.u32 %v597, 4294901760
    %599 = vmatpush1.xpose.msra.mxu0 %v598
    %600 = vmatprep.subr.mxu0 0.0
    %v601 = vand.u32 %v71, 4294901760
    %v602 = vsub.f32 %v71, %v601
    %v603 = vand.u32 %v602, 4294901760
    %604 = vmatpush1.xpose.msra.mxu0 %v603
    %605 = vmatprep.subr.mxu0 0.0
    %v606 = vand.u32 %v72, 4294901760
    %v607 = vsub.f32 %v72, %v606
    %v608 = vand.u32 %v607, 4294901760
    %609 = vmatpush1.xpose.msra.mxu0 %v608
    %610 = vmatprep.subr.mxu0 0.0
    %v611 = vand.u32 %v73, 4294901760
    %v612 = vsub.f32 %v73, %v611
    %v613 = vand.u32 %v612, 4294901760
    %614 = vmatpush1.xpose.msra.mxu0 %v613
    %615 = vmatprep.subr.mxu0 0.0
    %v616 = vand.u32 %v74, 4294901760
    %v617 = vsub.f32 %v74, %v616
    %v618 = vand.u32 %v617, 4294901760
    %619 = vmatpush1.xpose.msra.mxu0 %v618
    %620 = vmatprep.subr.mxu0 0.0
    %v621 = vand.u32 %v75, 4294901760
    %v622 = vsub.f32 %v75, %v621
    %v623 = vand.u32 %v622, 4294901760
    %624 = vmatpush1.xpose.msra.mxu0 %v623
    %625 = vmatprep.subr.mxu0 0.0
    %v626 = vand.u32 %v76, 4294901760
    %v627 = vsub.f32 %v76, %v626
    %v628 = vand.u32 %v627, 4294901760
    %629 = vmatpush1.xpose.msra.mxu0 %v628
    %630 = vmatprep.subr.mxu0 0.0
    %631 = vmatpush1.xpose.msra.mxu0 0.0
    %632 = vmatprep.subr.mxu0 0.0
    %633 = vmatpush1.xpose.msra.mxu0 0.0
    %634 = vmatprep.subr.mxu0 0.0
    %635 = vmatpush1.xpose.msra.mxu0 0.0
    %636 = vmatprep.subr.mxu0 0.0
    %637 = vmatpush1.xpose.msra.mxu0 0.0
    %638 = vmatprep.subr.mxu0 0.0
    %639 = vmatpush1.xpose.msra.mxu0 0.0
    %640 = vmatprep.subr.mxu0 0.0
    %641 = vmatpush1.xpose.msra.mxu0 0.0
    %642 = vmatprep.subr.mxu0 0.0
    %643 = vmatpush1.xpose.msra.mxu0 0.0
    %644 = vmatprep.subr.mxu0 0.0
    %645 = vmatpush1.xpose.msra.mxu0 0.0
    %646 = vmatprep.subr.mxu0 0.0
    %647 = vmatpush1.xpose.msra.mxu0 0.0
    %648 = vmatprep.subr.mxu0 0.0
    %649 = vmatpush1.xpose.msra.mxu0 0.0
    %650 = vmatprep.subr.mxu0 0.0
    %651 = vmatpush1.xpose.msra.mxu0 0.0
    %652 = vmatprep.subr.mxu0 0.0
    %653 = vmatpush1.xpose.msra.mxu0 0.0
    %654 = vmatprep.subr.mxu0 0.0
    %655 = vmatpush1.xpose.msra.mxu0 0.0
    %656 = vmatprep.subr.mxu0 0.0
    %657 = vmatpush1.xpose.msra.mxu0 0.0
    %658 = vmatprep.subr.mxu0 0.0
    %659 = vmatpush1.xpose.msra.mxu0 0.0
    %660 = vmatprep.subr.mxu0 0.0
    %661 = vmatpush1.xpose.msra.mxu0 0.0
    %662 = vmatprep.mubr.f32.mxu0 0.0
    %v663 = vand.u32 %v59, 4294901760
    %664 = vmatmul.mubr.f32.gmra.mrb[0].mxu0 %v663
    %v665 = vpop.f32.mrb[0].mxu0
    %v666 = vadd.f32 %v539, %v665
    %v667 = vpop.f32.mrb[0].mxu0
    %668 = vmatprep.mubr.f32.mxu0 0.0
    %v669 = vand.u32 %v60, 4294901760
    %670 = vmatmul.mubr.f32.gmra.mrb[0].mxu0 %v669
    %v671 = vpop.f32.mrb[0].mxu0
    %v672 = vadd.f32 %v547, %v671
    %v673 = vpop.f32.mrb[0].mxu0
    %674 = vdwg.mxu0
    %675 = vmatprep.subr.mxu0 0.0
    %v676 = vand.u32 %v61, 4294901760
    %677 = vmatpush1.xpose.msra.mxu0 %v676
    %678 = vmatprep.subr.mxu0 0.0
    %v679 = vand.u32 %v62, 4294901760
    %680 = vmatpush1.xpose.msra.mxu0 %v679
    %681 = vmatprep.subr.mxu0 0.0
    %v682 = vand.u32 %v63, 4294901760
    %683 = vmatpush1.xpose.msra.mxu0 %v682
    %684 = vmatprep.subr.mxu0 0.0
    %v685 = vand.u32 %v64, 4294901760
    %686 = vmatpush1.xpose.msra.mxu0 %v685
    %687 = vmatprep.subr.mxu0 0.0
    %v688 = vand.u32 %v65, 4294901760
    %689 = vmatpush1.xpose.msra.mxu0 %v688
    %690 = vmatprep.subr.mxu0 0.0
    %v691 = vand.u32 %v66, 4294901760
    %692 = vmatpush1.xpose.msra.mxu0 %v691
    %693 = vmatprep.subr.mxu0 0.0
    %v694 = vand.u32 %v67, 4294901760
    %695 = vmatpush1.xpose.msra.mxu0 %v694
    %696 = vmatprep.subr.mxu0 0.0
    %v697 = vand.u32 %v68, 4294901760
    %698 = vmatpush1.xpose.msra.mxu0 %v697
    %699 = vmatprep.subr.mxu0 0.0
    %v700 = vand.u32 %v69, 4294901760
    %701 = vmatpush1.xpose.msra.mxu0 %v700
    %702 = vmatprep.subr.mxu0 0.0
    %v703 = vand.u32 %v70, 4294901760
    %704 = vmatpush1.xpose.msra.mxu0 %v703
    %705 = vmatprep.subr.mxu0 0.0
    %v706 = vand.u32 %v71, 4294901760
    %707 = vmatpush1.xpose.msra.mxu0 %v706
    %708 = vmatprep.subr.mxu0 0.0
    %v709 = vand.u32 %v72, 4294901760
    %710 = vmatpush1.xpose.msra.mxu0 %v709
    %711 = vmatprep.subr.mxu0 0.0
    %v712 = vand.u32 %v73, 4294901760
    %713 = vmatpush1.xpose.msra.mxu0 %v712
    %714 = vmatprep.subr.mxu0 0.0
    %v715 = vand.u32 %v74, 4294901760
    %716 = vmatpush1.xpose.msra.mxu0 %v715
    %717 = vmatprep.subr.mxu0 0.0
    %v718 = vand.u32 %v75, 4294901760
    %719 = vmatpush1.xpose.msra.mxu0 %v718
    %720 = vmatprep.subr.mxu0 0.0
    %v721 = vand.u32 %v76, 4294901760
    %722 = vmatpush1.xpose.msra.mxu0 %v721
    %723 = vmatprep.subr.mxu0 0.0
    %724 = vmatpush1.xpose.msra.mxu0 0.0
    %725 = vmatprep.subr.mxu0 0.0
    %726 = vmatpush1.xpose.msra.mxu0 0.0
    %727 = vmatprep.subr.mxu0 0.0
    %728 = vmatpush1.xpose.msra.mxu0 0.0
    %729 = vmatprep.subr.mxu0 0.0
    %730 = vmatpush1.xpose.msra.mxu0 0.0
    %731 = vmatprep.subr.mxu0 0.0
    %732 = vmatpush1.xpose.msra.mxu0 0.0
    %733 = vmatprep.subr.mxu0 0.0
    %734 = vmatpush1.xpose.msra.mxu0 0.0
    %735 = vmatprep.subr.mxu0 0.0
    %736 = vmatpush1.xpose.msra.mxu0 0.0
    %737 = vmatprep.subr.mxu0 0.0
    %738 = vmatpush1.xpose.msra.mxu0 0.0
    %739 = vmatprep.subr.mxu0 0.0
    %740 = vmatpush1.xpose.msra.mxu0 0.0
    %741 = vmatprep.subr.mxu0 0.0
    %742 = vmatpush1.xpose.msra.mxu0 0.0
    %743 = vmatprep.subr.mxu0 0.0
    %744 = vmatpush1.xpose.msra.mxu0 0.0
    %745 = vmatprep.subr.mxu0 0.0
    %746 = vmatpush1.xpose.msra.mxu0 0.0
    %747 = vmatprep.subr.mxu0 0.0
    %748 = vmatpush1.xpose.msra.mxu0 0.0
    %749 = vmatprep.subr.mxu0 0.0
    %750 = vmatpush1.xpose.msra.mxu0 0.0
    %751 = vmatprep.subr.mxu0 0.0
    %752 = vmatpush1.xpose.msra.mxu0 0.0
    %753 = vmatprep.subr.mxu0 0.0
    %754 = vmatpush1.xpose.msra.mxu0 0.0
    %755 = vmatprep.mubr.f32.mxu0 0.0
    %v756 = vand.u32 %v59, 4294901760
    %757 = vmatmul.mubr.f32.gmra.mrb[0].mxu0 %v756
    %v758 = vpop.f32.mrb[0].mxu0
    %v759 = vadd.f32 %v666, %v758
    %v760 = vpop.f32.mrb[0].mxu0
    %761 = vmatprep.mubr.f32.mxu0 0.0
    %v762 = vand.u32 %v60, 4294901760
    %763 = vmatmul.mubr.f32.gmra.mrb[0].mxu0 %v762
    %v764 = vpop.f32.mrb[0].mxu0
    %v765 = vadd.f32 %v672, %v764
    %v766 = vpop.f32.mrb[0].mxu0
    %767 = vdwg.mxu0
    %v768 = vld [vmem:[#allocation7] sm:$0xff]
    %v769 = vld [vmem:[#allocation7 + $0x8] sm:$0xff]
    %v770 = vld [vmem:[#allocation7 + $0x10] sm:$0xff]
    %v771 = vld [vmem:[#allocation7 + $0x18] sm:$0xff]
    %v772 = vld [vmem:[#allocation7 + $0x20] sm:$0xff]
    %v773 = vld [vmem:[#allocation7 + $0x28] sm:$0xff]
    %v774 = vld [vmem:[#allocation7 + $0x30] sm:$0xff]
    %v775 = vld [vmem:[#allocation7 + $0x38] sm:$0xff]
    %v776 = vld [vmem:[#allocation7 + $0x40] sm:$0xff]
    %v777 = vld [vmem:[#allocation7 + $0x48] sm:$0xff]
    %v778 = vld [vmem:[#allocation7 + $0x50] sm:$0xff]
    %v779 = vld [vmem:[#allocation7 + $0x58] sm:$0xff]
    %v780 = vld [vmem:[#allocation7 + $0x60] sm:$0xff]
    %v781 = vld [vmem:[#allocation7 + $0x68] sm:$0xff]
    %v782 = vld [vmem:[#allocation7 + $0x70] sm:$0xff]
    %v783 = vld [vmem:[#allocation7 + $0x78] sm:$0xff]
    %784 = vmatprep.subr.mxu0 0.0
    %v785 = vand.u32 %v768, 4294901760
    %786 = vmatpush1.msra.mxu0 %v785
    %787 = vmatprep.subr.mxu0 0.0
    %v788 = vand.u32 %v769, 4294901760
    %789 = vmatpush1.msra.mxu0 %v788
    %790 = vmatprep.subr.mxu0 0.0
    %v791 = vand.u32 %v770, 4294901760
    %792 = vmatpush1.msra.mxu0 %v791
    %793 = vmatprep.subr.mxu0 0.0
    %v794 = vand.u32 %v771, 4294901760
    %795 = vmatpush1.msra.mxu0 %v794
    %796 = vmatprep.subr.mxu0 0.0
    %v797 = vand.u32 %v772, 4294901760
    %798 = vmatpush1.msra.mxu0 %v797
    %799 = vmatprep.subr.mxu0 0.0
    %v800 = vand.u32 %v773, 4294901760
    %801 = vmatpush1.msra.mxu0 %v800
    %802 = vmatprep.subr.mxu0 0.0
    %v803 = vand.u32 %v774, 4294901760
    %804 = vmatpush1.msra.mxu0 %v803
    %805 = vmatprep.subr.mxu0 0.0
    %v806 = vand.u32 %v775, 4294901760
    %807 = vmatpush1.msra.mxu0 %v806
    %808 = vmatprep.subr.mxu0 0.0
    %v809 = vand.u32 %v776, 4294901760
    %810 = vmatpush1.msra.mxu0 %v809
    %811 = vmatprep.subr.mxu0 0.0
    %v812 = vand.u32 %v777, 4294901760
    %813 = vmatpush1.msra.mxu0 %v812
    %814 = vmatprep.subr.mxu0 0.0
    %v815 = vand.u32 %v778, 4294901760
    %816 = vmatpush1.msra.mxu0 %v815
    %817 = vmatprep.subr.mxu0 0.0
    %v818 = vand.u32 %v779, 4294901760
    %819 = vmatpush1.msra.mxu0 %v818
    %820 = vmatprep.subr.mxu0 0.0
    %v821 = vand.u32 %v780, 4294901760
    %822 = vmatpush1.msra.mxu0 %v821
    %823 = vmatprep.subr.mxu0 0.0
    %v824 = vand.u32 %v781, 4294901760
    %825 = vmatpush1.msra.mxu0 %v824
    %826 = vmatprep.subr.mxu0 0.0
    %v827 = vand.u32 %v782, 4294901760
    %828 = vmatpush1.msra.mxu0 %v827
    %829 = vmatprep.subr.mxu0 0.0
    %v830 = vand.u32 %v783, 4294901760
    %831 = vmatpush1.msra.mxu0 %v830
    %832 = vmatprep.subr.mxu0 0.0
    %833 = vmatpush1.msra.mxu0 0.0
    %834 = vmatprep.subr.mxu0 0.0
    %835 = vmatpush1.msra.mxu0 0.0
    %836 = vmatprep.subr.mxu0 0.0
    %837 = vmatpush1.msra.mxu0 0.0
    %838 = vmatprep.subr.mxu0 0.0
    %839 = vmatpush1.msra.mxu0 0.0
    %840 = vmatprep.subr.mxu0 0.0
    %841 = vmatpush1.msra.mxu0 0.0
    %842 = vmatprep.subr.mxu0 0.0
    %843 = vmatpush1.msra.mxu0 0.0
    %844 = vmatprep.subr.mxu0 0.0
    %845 = vmatpush1.msra.mxu0 0.0
    %846 = vmatprep.subr.mxu0 0.0
    %847 = vmatpush1.msra.mxu0 0.0
    %848 = vmatprep.subr.mxu0 0.0
    %849 = vmatpush1.msra.mxu0 0.0
    %850 = vmatprep.subr.mxu0 0.0
    %851 = vmatpush1.msra.mxu0 0.0
    %852 = vmatprep.subr.mxu0 0.0
    %853 = vmatpush1.msra.mxu0 0.0
    %854 = vmatprep.subr.mxu0 0.0
    %855 = vmatpush1.msra.mxu0 0.0
    %856 = vmatprep.subr.mxu0 0.0
    %857 = vmatpush1.msra.mxu0 0.0
    %858 = vmatprep.subr.mxu0 0.0
    %859 = vmatpush1.msra.mxu0 0.0
    %860 = vmatprep.subr.mxu0 0.0
    %861 = vmatpush1.msra.mxu0 0.0
    %862 = vmatprep.subr.mxu0 0.0
    %863 = vmatpush1.msra.mxu0 0.0
    %864 = vmatprep.mubr.f32.mxu0 0.0
    %v865 = vand.u32 %v759, 4294901760
    %v866 = vsub.f32 %v759, %v865
    %v867 = vand.u32 %v866, 4294901760
    %v868 = vsub.f32 %v866, %v867
    %v869 = vand.u32 %v868, 4294901760
    %870 = vmatmul.mubr.f32.gmra.mrb[0].mxu0 %v869
    %v871 = vpop.f32.mrb[0].mxu0
    %v872 = vadd.f32 0.0, %v871
    %v873 = vpop.f32.mrb[0].mxu0
    %874 = vmatprep.mubr.f32.mxu0 0.0
    %v875 = vand.u32 %v765, 4294901760
    %v876 = vsub.f32 %v765, %v875
    %v877 = vand.u32 %v876, 4294901760
    %v878 = vsub.f32 %v876, %v877
    %v879 = vand.u32 %v878, 4294901760
    %880 = vmatmul.mubr.f32.gmra.mrb[0].mxu0 %v879
    %v881 = vpop.f32.mrb[0].mxu0
    %v882 = vadd.f32 0.0, %v881
    %v883 = vpop.f32.mrb[0].mxu0
    %884 = vdwg.mxu0
    %885 = vmatprep.subr.mxu0 0.0
    %v886 = vand.u32 %v768, 4294901760
    %v887 = vsub.f32 %v768, %v886
    %v888 = vand.u32 %v887, 4294901760
    %v889 = vsub.f32 %v887, %v888
    %v890 = vand.u32 %v889, 4294901760
    %891 = vmatpush1.msra.mxu0 %v890
    %892 = vmatprep.subr.mxu0 0.0
    %v893 = vand.u32 %v769, 4294901760
    %v894 = vsub.f32 %v769, %v893
    %v895 = vand.u32 %v894, 4294901760
    %v896 = vsub.f32 %v894, %v895
    %v897 = vand.u32 %v896, 4294901760
    %898 = vmatpush1.msra.mxu0 %v897
    %899 = vmatprep.subr.mxu0 0.0
    %v900 = vand.u32 %v770, 4294901760
    %v901 = vsub.f32 %v770, %v900
    %v902 = vand.u32 %v901, 4294901760
    %v903 = vsub.f32 %v901, %v902
    %v904 = vand.u32 %v903, 4294901760
    %905 = vmatpush1.msra.mxu0 %v904
    %906 = vmatprep.subr.mxu0 0.0
    %v907 = vand.u32 %v771, 4294901760
    %v908 = vsub.f32 %v771, %v907
    %v909 = vand.u32 %v908, 4294901760
    %v910 = vsub.f32 %v908, %v909
    %v911 = vand.u32 %v910, 4294901760
    %912 = vmatpush1.msra.mxu0 %v911
    %913 = vmatprep.subr.mxu0 0.0
    %v914 = vand.u32 %v772, 4294901760
    %v915 = vsub.f32 %v772, %v914
    %v916 = vand.u32 %v915, 4294901760
    %v917 = vsub.f32 %v915, %v916
    %v918 = vand.u32 %v917, 4294901760
    %919 = vmatpush1.msra.mxu0 %v918
    %920 = vmatprep.subr.mxu0 0.0
    %v921 = vand.u32 %v773, 4294901760
    %v922 = vsub.f32 %v773, %v921
    %v923 = vand.u32 %v922, 4294901760
    %v924 = vsub.f32 %v922, %v923
    %v925 = vand.u32 %v924, 4294901760
    %926 = vmatpush1.msra.mxu0 %v925
    %927 = vmatprep.subr.mxu0 0.0
    %v928 = vand.u32 %v774, 4294901760
    %v929 = vsub.f32 %v774, %v928
    %v930 = vand.u32 %v929, 4294901760
    %v931 = vsub.f32 %v929, %v930
    %v932 = vand.u32 %v931, 4294901760
    %933 = vmatpush1.msra.mxu0 %v932
    %934 = vmatprep.subr.mxu0 0.0
    %v935 = vand.u32 %v775, 4294901760
    %v936 = vsub.f32 %v775, %v935
    %v937 = vand.u32 %v936, 4294901760
    %v938 = vsub.f32 %v936, %v937
    %v939 = vand.u32 %v938, 4294901760
    %940 = vmatpush1.msra.mxu0 %v939
    %941 = vmatprep.subr.mxu0 0.0
    %v942 = vand.u32 %v776, 4294901760
    %v943 = vsub.f32 %v776, %v942
    %v944 = vand.u32 %v943, 4294901760
    %v945 = vsub.f32 %v943, %v944
    %v946 = vand.u32 %v945, 4294901760
    %947 = vmatpush1.msra.mxu0 %v946
    %948 = vmatprep.subr.mxu0 0.0
    %v949 = vand.u32 %v777, 4294901760
    %v950 = vsub.f32 %v777, %v949
    %v951 = vand.u32 %v950, 4294901760
    %v952 = vsub.f32 %v950, %v951
    %v953 = vand.u32 %v952, 4294901760
    %954 = vmatpush1.msra.mxu0 %v953
    %955 = vmatprep.subr.mxu0 0.0
    %v956 = vand.u32 %v778, 4294901760
    %v957 = vsub.f32 %v778, %v956
    %v958 = vand.u32 %v957, 4294901760
    %v959 = vsub.f32 %v957, %v958
    %v960 = vand.u32 %v959, 4294901760
    %961 = vmatpush1.msra.mxu0 %v960
    %962 = vmatprep.subr.mxu0 0.0
    %v963 = vand.u32 %v779, 4294901760
    %v964 = vsub.f32 %v779, %v963
    %v965 = vand.u32 %v964, 4294901760
    %v966 = vsub.f32 %v964, %v965
    %v967 = vand.u32 %v966, 4294901760
    %968 = vmatpush1.msra.mxu0 %v967
    %969 = vmatprep.subr.mxu0 0.0
    %v970 = vand.u32 %v780, 4294901760
    %v971 = vsub.f32 %v780, %v970
    %v972 = vand.u32 %v971, 4294901760
    %v973 = vsub.f32 %v971, %v972
    %v974 = vand.u32 %v973, 4294901760
    %975 = vmatpush1.msra.mxu0 %v974
    %976 = vmatprep.subr.mxu0 0.0
    %v977 = vand.u32 %v781, 4294901760
    %v978 = vsub.f32 %v781, %v977
    %v979 = vand.u32 %v978, 4294901760
    %v980 = vsub.f32 %v978, %v979
    %v981 = vand.u32 %v980, 4294901760
    %982 = vmatpush1.msra.mxu0 %v981
    %983 = vmatprep.subr.mxu0 0.0
    %v984 = vand.u32 %v782, 4294901760
    %v985 = vsub.f32 %v782, %v984
    %v986 = vand.u32 %v985, 4294901760
    %v987 = vsub.f32 %v985, %v986
    %v988 = vand.u32 %v987, 4294901760
    %989 = vmatpush1.msra.mxu0 %v988
    %990 = vmatprep.subr.mxu0 0.0
    %v991 = vand.u32 %v783, 4294901760
    %v992 = vsub.f32 %v783, %v991
    %v993 = vand.u32 %v992, 4294901760
    %v994 = vsub.f32 %v992, %v993
    %v995 = vand.u32 %v994, 4294901760
    %996 = vmatpush1.msra.mxu0 %v995
    %997 = vmatprep.subr.mxu0 0.0
    %998 = vmatpush1.msra.mxu0 0.0
    %999 = vmatprep.subr.mxu0 0.0
    %1000 = vmatpush1.msra.mxu0 0.0
    %1001 = vmatprep.subr.mxu0 0.0
    %1002 = vmatpush1.msra.mxu0 0.0
    %1003 = vmatprep.subr.mxu0 0.0
    %1004 = vmatpush1.msra.mxu0 0.0
    %1005 = vmatprep.subr.mxu0 0.0
    %1006 = vmatpush1.msra.mxu0 0.0
    %1007 = vmatprep.subr.mxu0 0.0
    %1008 = vmatpush1.msra.mxu0 0.0
    %1009 = vmatprep.subr.mxu0 0.0
    %1010 = vmatpush1.msra.mxu0 0.0
    %1011 = vmatprep.subr.mxu0 0.0
    %1012 = vmatpush1.msra.mxu0 0.0
    %1013 = vmatprep.subr.mxu0 0.0
    %1014 = vmatpush1.msra.mxu0 0.0
    %1015 = vmatprep.subr.mxu0 0.0
    %1016 = vmatpush1.msra.mxu0 0.0
    %1017 = vmatprep.subr.mxu0 0.0
    %1018 = vmatpush1.msra.mxu0 0.0
    %1019 = vmatprep.subr.mxu0 0.0
    %1020 = vmatpush1.msra.mxu0 0.0
    %1021 = vmatprep.subr.mxu0 0.0
    %1022 = vmatpush1.msra.mxu0 0.0
    %1023 = vmatprep.subr.mxu0 0.0
    %1024 = vmatpush1.msra.mxu0 0.0
    %1025 = vmatprep.subr.mxu0 0.0
    %1026 = vmatpush1.msra.mxu0 0.0
    %1027 = vmatprep.subr.mxu0 0.0
    %1028 = vmatpush1.msra.mxu0 0.0
    %1029 = vmatprep.mubr.f32.mxu0 0.0
    %v1030 = vand.u32 %v759, 4294901760
    %1031 = vmatmul.mubr.f32.gmra.mrb[0].mxu0 %v1030
    %v1032 = vpop.f32.mrb[0].mxu0
    %v1033 = vadd.f32 %v872, %v1032
    %v1034 = vpop.f32.mrb[0].mxu0
    %1035 = vmatprep.mubr.f32.mxu0 0.0
    %v1036 = vand.u32 %v765, 4294901760
    %1037 = vmatmul.mubr.f32.gmra.mrb[0].mxu0 %v1036
    %v1038 = vpop.f32.mrb[0].mxu0
    %v1039 = vadd.f32 %v882, %v1038
    %v1040 = vpop.f32.mrb[0].mxu0
    %1041 = vdwg.mxu0
    %1042 = vmatprep.subr.mxu0 0.0
    %v1043 = vand.u32 %v768, 4294901760
    %v1044 = vsub.f32 %v768, %v1043
    %1045 = vmatpush1.msra.mxu0 %v1044
    %1046 = vmatprep.subr.mxu0 0.0
    %v1047 = vand.u32 %v769, 4294901760
    %v1048 = vsub.f32 %v769, %v1047
    %1049 = vmatpush1.msra.mxu0 %v1048
    %1050 = vmatprep.subr.mxu0 0.0
    %v1051 = vand.u32 %v770, 4294901760
    %v1052 = vsub.f32 %v770, %v1051
    %1053 = vmatpush1.msra.mxu0 %v1052
    %1054 = vmatprep.subr.mxu0 0.0
    %v1055 = vand.u32 %v771, 4294901760
    %v1056 = vsub.f32 %v771, %v1055
    %1057 = vmatpush1.msra.mxu0 %v1056
    %1058 = vmatprep.subr.mxu0 0.0
    %v1059 = vand.u32 %v772, 4294901760
    %v1060 = vsub.f32 %v772, %v1059
    %1061 = vmatpush1.msra.mxu0 %v1060
    %1062 = vmatprep.subr.mxu0 0.0
    %v1063 = vand.u32 %v773, 4294901760
    %v1064 = vsub.f32 %v773, %v1063
    %1065 = vmatpush1.msra.mxu0 %v1064
    %1066 = vmatprep.subr.mxu0 0.0
    %v1067 = vand.u32 %v774, 4294901760
    %v1068 = vsub.f32 %v774, %v1067
    %1069 = vmatpush1.msra.mxu0 %v1068
    %1070 = vmatprep.subr.mxu0 0.0
    %v1071 = vand.u32 %v775, 4294901760
    %v1072 = vsub.f32 %v775, %v1071
    %1073 = vmatpush1.msra.mxu0 %v1072
    %1074 = vmatprep.subr.mxu0 0.0
    %v1075 = vand.u32 %v776, 4294901760
    %v1076 = vsub.f32 %v776, %v1075
    %1077 = vmatpush1.msra.mxu0 %v1076
    %1078 = vmatprep.subr.mxu0 0.0
    %v1079 = vand.u32 %v777, 4294901760
    %v1080 = vsub.f32 %v777, %v1079
    %1081 = vmatpush1.msra.mxu0 %v1080
    %1082 = vmatprep.subr.mxu0 0.0
    %v1083 = vand.u32 %v778, 4294901760
    %v1084 = vsub.f32 %v778, %v1083
    %1085 = vmatpush1.msra.mxu0 %v1084
    %1086 = vmatprep.subr.mxu0 0.0
    %v1087 = vand.u32 %v779, 4294901760
    %v1088 = vsub.f32 %v779, %v1087
    %1089 = vmatpush1.msra.mxu0 %v1088
    %1090 = vmatprep.subr.mxu0 0.0
    %v1091 = vand.u32 %v780, 4294901760
    %v1092 = vsub.f32 %v780, %v1091
    %1093 = vmatpush1.msra.mxu0 %v1092
    %1094 = vmatprep.subr.mxu0 0.0
    %v1095 = vand.u32 %v781, 4294901760
    %v1096 = vsub.f32 %v781, %v1095
    %1097 = vmatpush1.msra.mxu0 %v1096
    %1098 = vmatprep.subr.mxu0 0.0
    %v1099 = vand.u32 %v782, 4294901760
    %v1100 = vsub.f32 %v782, %v1099
    %1101 = vmatpush1.msra.mxu0 %v1100
    %1102 = vmatprep.subr.mxu0 0.0
    %v1103 = vand.u32 %v783, 4294901760
    %v1104 = vsub.f32 %v783, %v1103
    %1105 = vmatpush1.msra.mxu0 %v1104
    %1106 = vmatprep.subr.mxu0 0.0
    %1107 = vmatpush1.msra.mxu0 0.0
    %1108 = vmatprep.subr.mxu0 0.0
    %1109 = vmatpush1.msra.mxu0 0.0
    %1110 = vmatprep.subr.mxu0 0.0
    %1111 = vmatpush1.msra.mxu0 0.0
    %1112 = vmatprep.subr.mxu0 0.0
    %1113 = vmatpush1.msra.mxu0 0.0
    %1114 = vmatprep.subr.mxu0 0.0
    %1115 = vmatpush1.msra.mxu0 0.0
    %1116 = vmatprep.subr.mxu0 0.0
    %1117 = vmatpush1.msra.mxu0 0.0
    %1118 = vmatprep.subr.mxu0 0.0
    %1119 = vmatpush1.msra.mxu0 0.0
    %1120 = vmatprep.subr.mxu0 0.0
    %1121 = vmatpush1.msra.mxu0 0.0
    %1122 = vmatprep.subr.mxu0 0.0
    %1123 = vmatpush1.msra.mxu0 0.0
    %1124 = vmatprep.subr.mxu0 0.0
    %1125 = vmatpush1.msra.mxu0 0.0
    %1126 = vmatprep.subr.mxu0 0.0
    %1127 = vmatpush1.msra.mxu0 0.0
    %1128 = vmatprep.subr.mxu0 0.0
    %1129 = vmatpush1.msra.mxu0 0.0
    %1130 = vmatprep.subr.mxu0 0.0
    %1131 = vmatpush1.msra.mxu0 0.0
    %1132 = vmatprep.subr.mxu0 0.0
    %1133 = vmatpush1.msra.mxu0 0.0
    %1134 = vmatprep.subr.mxu0 0.0
    %1135 = vmatpush1.msra.mxu0 0.0
    %1136 = vmatprep.subr.mxu0 0.0
    %1137 = vmatpush1.msra.mxu0 0.0
    %1138 = vmatprep.mubr.f32.mxu0 0.0
    %v1139 = vand.u32 %v759, 4294901760
    %v1140 = vsub.f32 %v759, %v1139
    %1141 = vmatmul.mubr.f32.gmra.mrb[0].mxu0 %v1140
    %v1142 = vpop.f32.mrb[0].mxu0
    %v1143 = vadd.f32 %v1033, %v1142
    %v1144 = vpop.f32.mrb[0].mxu0
    %1145 = vmatprep.mubr.f32.mxu0 0.0
    %v1146 = vand.u32 %v765, 4294901760
    %v1147 = vsub.f32 %v765, %v1146
    %1148 = vmatmul.mubr.f32.gmra.mrb[0].mxu0 %v1147
    %v1149 = vpop.f32.mrb[0].mxu0
    %v1150 = vadd.f32 %v1039, %v1149
    %v1151 = vpop.f32.mrb[0].mxu0
    %1152 = vdwg.mxu0
    %1153 = vmatprep.subr.mxu0 0.0
    %v1154 = vand.u32 %v768, 4294901760
    %1155 = vmatpush1.msra.mxu0 %v1154
    %1156 = vmatprep.subr.mxu0 0.0
    %v1157 = vand.u32 %v769, 4294901760
    %1158 = vmatpush1.msra.mxu0 %v1157
    %1159 = vmatprep.subr.mxu0 0.0
    %v1160 = vand.u32 %v770, 4294901760
    %1161 = vmatpush1.msra.mxu0 %v1160
    %1162 = vmatprep.subr.mxu0 0.0
    %v1163 = vand.u32 %v771, 4294901760
    %1164 = vmatpush1.msra.mxu0 %v1163
    %1165 = vmatprep.subr.mxu0 0.0
    %v1166 = vand.u32 %v772, 4294901760
    %1167 = vmatpush1.msra.mxu0 %v1166
    %1168 = vmatprep.subr.mxu0 0.0
    %v1169 = vand.u32 %v773, 4294901760
    %1170 = vmatpush1.msra.mxu0 %v1169
    %1171 = vmatprep.subr.mxu0 0.0
    %v1172 = vand.u32 %v774, 4294901760
    %1173 = vmatpush1.msra.mxu0 %v1172
    %1174 = vmatprep.subr.mxu0 0.0
    %v1175 = vand.u32 %v775, 4294901760
    %1176 = vmatpush1.msra.mxu0 %v1175
    %1177 = vmatprep.subr.mxu0 0.0
    %v1178 = vand.u32 %v776, 4294901760
    %1179 = vmatpush1.msra.mxu0 %v1178
    %1180 = vmatprep.subr.mxu0 0.0
    %v1181 = vand.u32 %v777, 4294901760
    %1182 = vmatpush1.msra.mxu0 %v1181
    %1183 = vmatprep.subr.mxu0 0.0
    %v1184 = vand.u32 %v778, 4294901760
    %1185 = vmatpush1.msra.mxu0 %v1184
    %1186 = vmatprep.subr.mxu0 0.0
    %v1187 = vand.u32 %v779, 4294901760
    %1188 = vmatpush1.msra.mxu0 %v1187
    %1189 = vmatprep.subr.mxu0 0.0
    %v1190 = vand.u32 %v780, 4294901760
    %1191 = vmatpush1.msra.mxu0 %v1190
    %1192 = vmatprep.subr.mxu0 0.0
    %v1193 = vand.u32 %v781, 4294901760
    %1194 = vmatpush1.msra.mxu0 %v1193
    %1195 = vmatprep.subr.mxu0 0.0
    %v1196 = vand.u32 %v782, 4294901760
    %1197 = vmatpush1.msra.mxu0 %v1196
    %1198 = vmatprep.subr.mxu0 0.0
    %v1199 = vand.u32 %v783, 4294901760
    %1200 = vmatpush1.msra.mxu0 %v1199
    %1201 = vmatprep.subr.mxu0 0.0
    %1202 = vmatpush1.msra.mxu0 0.0
    %1203 = vmatprep.subr.mxu0 0.0
    %1204 = vmatpush1.msra.mxu0 0.0
    %1205 = vmatprep.subr.mxu0 0.0
    %1206 = vmatpush1.msra.mxu0 0.0
    %1207 = vmatprep.subr.mxu0 0.0
    %1208 = vmatpush1.msra.mxu0 0.0
    %1209 = vmatprep.subr.mxu0 0.0
    %1210 = vmatpush1.msra.mxu0 0.0
    %1211 = vmatprep.subr.mxu0 0.0
    %1212 = vmatpush1.msra.mxu0 0.0
    %1213 = vmatprep.subr.mxu0 0.0
    %1214 = vmatpush1.msra.mxu0 0.0
    %1215 = vmatprep.subr.mxu0 0.0
    %1216 = vmatpush1.msra.mxu0 0.0
    %1217 = vmatprep.subr.mxu0 0.0
    %1218 = vmatpush1.msra.mxu0 0.0
    %1219 = vmatprep.subr.mxu0 0.0
    %1220 = vmatpush1.msra.mxu0 0.0
    %1221 = vmatprep.subr.mxu0 0.0
    %1222 = vmatpush1.msra.mxu0 0.0
    %1223 = vmatprep.subr.mxu0 0.0
    %1224 = vmatpush1.msra.mxu0 0.0
    %1225 = vmatprep.subr.mxu0 0.0
    %1226 = vmatpush1.msra.mxu0 0.0
    %1227 = vmatprep.subr.mxu0 0.0
    %1228 = vmatpush1.msra.mxu0 0.0
    %1229 = vmatprep.subr.mxu0 0.0
    %1230 = vmatpush1.msra.mxu0 0.0
    %1231 = vmatprep.subr.mxu0 0.0
    %1232 = vmatpush1.msra.mxu0 0.0
    %1233 = vmatprep.mubr.f32.mxu0 0.0
    %v1234 = vand.u32 %v759, 4294901760
    %v1235 = vsub.f32 %v759, %v1234
    %v1236 = vand.u32 %v1235, 4294901760
    %1237 = vmatmul.mubr.f32.gmra.mrb[0].mxu0 %v1236
    %v1238 = vpop.f32.mrb[0].mxu0
    %v1239 = vadd.f32 %v1143, %v1238
    %v1240 = vpop.f32.mrb[0].mxu0
    %1241 = vmatprep.mubr.f32.mxu0 0.0
    %v1242 = vand.u32 %v765, 4294901760
    %v1243 = vsub.f32 %v765, %v1242
    %v1244 = vand.u32 %v1243, 4294901760
    %1245 = vmatmul.mubr.f32.gmra.mrb[0].mxu0 %v1244
    %v1246 = vpop.f32.mrb[0].mxu0
    %v1247 = vadd.f32 %v1150, %v1246
    %v1248 = vpop.f32.mrb[0].mxu0
    %1249 = vdwg.mxu0
    %1250 = vmatprep.subr.mxu0 0.0
    %v1251 = vand.u32 %v768, 4294901760
    %v1252 = vsub.f32 %v768, %v1251
    %v1253 = vand.u32 %v1252, 4294901760
    %1254 = vmatpush1.msra.mxu0 %v1253
    %1255 = vmatprep.subr.mxu0 0.0
    %v1256 = vand.u32 %v769, 4294901760
    %v1257 = vsub.f32 %v769, %v1256
    %v1258 = vand.u32 %v1257, 4294901760
    %1259 = vmatpush1.msra.mxu0 %v1258
    %1260 = vmatprep.subr.mxu0 0.0
    %v1261 = vand.u32 %v770, 4294901760
    %v1262 = vsub.f32 %v770, %v1261
    %v1263 = vand.u32 %v1262, 4294901760
    %1264 = vmatpush1.msra.mxu0 %v1263
    %1265 = vmatprep.subr.mxu0 0.0
    %v1266 = vand.u32 %v771, 4294901760
    %v1267 = vsub.f32 %v771, %v1266
    %v1268 = vand.u32 %v1267, 4294901760
    %1269 = vmatpush1.msra.mxu0 %v1268
    %1270 = vmatprep.subr.mxu0 0.0
    %v1271 = vand.u32 %v772, 4294901760
    %v1272 = vsub.f32 %v772, %v1271
    %v1273 = vand.u32 %v1272, 4294901760
    %1274 = vmatpush1.msra.mxu0 %v1273
    %1275 = vmatprep.subr.mxu0 0.0
    %v1276 = vand.u32 %v773, 4294901760
    %v1277 = vsub.f32 %v773, %v1276
    %v1278 = vand.u32 %v1277, 4294901760
    %1279 = vmatpush1.msra.mxu0 %v1278
    %1280 = vmatprep.subr.mxu0 0.0
    %v1281 = vand.u32 %v774, 4294901760
    %v1282 = vsub.f32 %v774, %v1281
    %v1283 = vand.u32 %v1282, 4294901760
    %1284 = vmatpush1.msra.mxu0 %v1283
    %1285 = vmatprep.subr.mxu0 0.0
    %v1286 = vand.u32 %v775, 4294901760
    %v1287 = vsub.f32 %v775, %v1286
    %v1288 = vand.u32 %v1287, 4294901760
    %1289 = vmatpush1.msra.mxu0 %v1288
    %1290 = vmatprep.subr.mxu0 0.0
    %v1291 = vand.u32 %v776, 4294901760
    %v1292 = vsub.f32 %v776, %v1291
    %v1293 = vand.u32 %v1292, 4294901760
    %1294 = vmatpush1.msra.mxu0 %v1293
    %1295 = vmatprep.subr.mxu0 0.0
    %v1296 = vand.u32 %v777, 4294901760
    %v1297 = vsub.f32 %v777, %v1296
    %v1298 = vand.u32 %v1297, 4294901760
    %1299 = vmatpush1.msra.mxu0 %v1298
    %1300 = vmatprep.subr.mxu0 0.0
    %v1301 = vand.u32 %v778, 4294901760
    %v1302 = vsub.f32 %v778, %v1301
    %v1303 = vand.u32 %v1302, 4294901760
    %1304 = vmatpush1.msra.mxu0 %v1303
    %1305 = vmatprep.subr.mxu0 0.0
    %v1306 = vand.u32 %v779, 4294901760
    %v1307 = vsub.f32 %v779, %v1306
    %v1308 = vand.u32 %v1307, 4294901760
    %1309 = vmatpush1.msra.mxu0 %v1308
    %1310 = vmatprep.subr.mxu0 0.0
    %v1311 = vand.u32 %v780, 4294901760
    %v1312 = vsub.f32 %v780, %v1311
    %v1313 = vand.u32 %v1312, 4294901760
    %1314 = vmatpush1.msra.mxu0 %v1313
    %1315 = vmatprep.subr.mxu0 0.0
    %v1316 = vand.u32 %v781, 4294901760
    %v1317 = vsub.f32 %v781, %v1316
    %v1318 = vand.u32 %v1317, 4294901760
    %1319 = vmatpush1.msra.mxu0 %v1318
    %1320 = vmatprep.subr.mxu0 0.0
    %v1321 = vand.u32 %v782, 4294901760
    %v1322 = vsub.f32 %v782, %v1321
    %v1323 = vand.u32 %v1322, 4294901760
    %1324 = vmatpush1.msra.mxu0 %v1323
    %1325 = vmatprep.subr.mxu0 0.0
    %v1326 = vand.u32 %v783, 4294901760
    %v1327 = vsub.f32 %v783, %v1326
    %v1328 = vand.u32 %v1327, 4294901760
    %1329 = vmatpush1.msra.mxu0 %v1328
    %1330 = vmatprep.subr.mxu0 0.0
    %1331 = vmatpush1.msra.mxu0 0.0
    %1332 = vmatprep.subr.mxu0 0.0
    %1333 = vmatpush1.msra.mxu0 0.0
    %1334 = vmatprep.subr.mxu0 0.0
    %1335 = vmatpush1.msra.mxu0 0.0
    %1336 = vmatprep.subr.mxu0 0.0
    %1337 = vmatpush1.msra.mxu0 0.0
    %1338 = vmatprep.subr.mxu0 0.0
    %1339 = vmatpush1.msra.mxu0 0.0
    %1340 = vmatprep.subr.mxu0 0.0
    %1341 = vmatpush1.msra.mxu0 0.0
    %1342 = vmatprep.subr.mxu0 0.0
    %1343 = vmatpush1.msra.mxu0 0.0
    %1344 = vmatprep.subr.mxu0 0.0
    %1345 = vmatpush1.msra.mxu0 0.0
    %1346 = vmatprep.subr.mxu0 0.0
    %1347 = vmatpush1.msra.mxu0 0.0
    %1348 = vmatprep.subr.mxu0 0.0
    %1349 = vmatpush1.msra.mxu0 0.0
    %1350 = vmatprep.subr.mxu0 0.0
    %1351 = vmatpush1.msra.mxu0 0.0
    %1352 = vmatprep.subr.mxu0 0.0
    %1353 = vmatpush1.msra.mxu0 0.0
    %1354 = vmatprep.subr.mxu0 0.0
    %1355 = vmatpush1.msra.mxu0 0.0
    %1356 = vmatprep.subr.mxu0 0.0
    %1357 = vmatpush1.msra.mxu0 0.0
    %1358 = vmatprep.subr.mxu0 0.0
    %1359 = vmatpush1.msra.mxu0 0.0
    %1360 = vmatprep.subr.mxu0 0.0
    %1361 = vmatpush1.msra.mxu0 0.0
    %1362 = vmatprep.mubr.f32.mxu0 0.0
    %v1363 = vand.u32 %v759, 4294901760
    %1364 = vmatmul.mubr.f32.gmra.mrb[0].mxu0 %v1363
    %v1365 = vpop.f32.mrb[0].mxu0
    %v1366 = vadd.f32 %v1239, %v1365
    %v1367 = vpop.f32.mrb[0].mxu0
    %1368 = vmatprep.mubr.f32.mxu0 0.0
    %v1369 = vand.u32 %v765, 4294901760
    %1370 = vmatmul.mubr.f32.gmra.mrb[0].mxu0 %v1369
    %v1371 = vpop.f32.mrb[0].mxu0
    %v1372 = vadd.f32 %v1247, %v1371
    %v1373 = vpop.f32.mrb[0].mxu0
    %1374 = vdwg.mxu0
    %1375 = vmatprep.subr.mxu0 0.0
    %v1376 = vand.u32 %v768, 4294901760
    %1377 = vmatpush1.msra.mxu0 %v1376
    %1378 = vmatprep.subr.mxu0 0.0
    %v1379 = vand.u32 %v769, 4294901760
    %1380 = vmatpush1.msra.mxu0 %v1379
    %1381 = vmatprep.subr.mxu0 0.0
    %v1382 = vand.u32 %v770, 4294901760
    %1383 = vmatpush1.msra.mxu0 %v1382
    %1384 = vmatprep.subr.mxu0 0.0
    %v1385 = vand.u32 %v771, 4294901760
    %1386 = vmatpush1.msra.mxu0 %v1385
    %1387 = vmatprep.subr.mxu0 0.0
    %v1388 = vand.u32 %v772, 4294901760
    %1389 = vmatpush1.msra.mxu0 %v1388
    %1390 = vmatprep.subr.mxu0 0.0
    %v1391 = vand.u32 %v773, 4294901760
    %1392 = vmatpush1.msra.mxu0 %v1391
    %1393 = vmatprep.subr.mxu0 0.0
    %v1394 = vand.u32 %v774, 4294901760
    %1395 = vmatpush1.msra.mxu0 %v1394
    %1396 = vmatprep.subr.mxu0 0.0
    %v1397 = vand.u32 %v775, 4294901760
    %1398 = vmatpush1.msra.mxu0 %v1397
    %1399 = vmatprep.subr.mxu0 0.0
    %v1400 = vand.u32 %v776, 4294901760
    %1401 = vmatpush1.msra.mxu0 %v1400
    %1402 = vmatprep.subr.mxu0 0.0
    %v1403 = vand.u32 %v777, 4294901760
    %1404 = vmatpush1.msra.mxu0 %v1403
    %1405 = vmatprep.subr.mxu0 0.0
    %v1406 = vand.u32 %v778, 4294901760
    %1407 = vmatpush1.msra.mxu0 %v1406
    %1408 = vmatprep.subr.mxu0 0.0
    %v1409 = vand.u32 %v779, 4294901760
    %1410 = vmatpush1.msra.mxu0 %v1409
    %1411 = vmatprep.subr.mxu0 0.0
    %v1412 = vand.u32 %v780, 4294901760
    %1413 = vmatpush1.msra.mxu0 %v1412
    %1414 = vmatprep.subr.mxu0 0.0
    %v1415 = vand.u32 %v781, 4294901760
    %1416 = vmatpush1.msra.mxu0 %v1415
    %1417 = vmatprep.subr.mxu0 0.0
    %v1418 = vand.u32 %v782, 4294901760
    %1419 = vmatpush1.msra.mxu0 %v1418
    %1420 = vmatprep.subr.mxu0 0.0
    %v1421 = vand.u32 %v783, 4294901760
    %1422 = vmatpush1.msra.mxu0 %v1421
    %1423 = vmatprep.subr.mxu0 0.0
    %1424 = vmatpush1.msra.mxu0 0.0
    %1425 = vmatprep.subr.mxu0 0.0
    %1426 = vmatpush1.msra.mxu0 0.0
    %1427 = vmatprep.subr.mxu0 0.0
    %1428 = vmatpush1.msra.mxu0 0.0
    %1429 = vmatprep.subr.mxu0 0.0
    %1430 = vmatpush1.msra.mxu0 0.0
    %1431 = vmatprep.subr.mxu0 0.0
    %1432 = vmatpush1.msra.mxu0 0.0
    %1433 = vmatprep.subr.mxu0 0.0
    %1434 = vmatpush1.msra.mxu0 0.0
    %1435 = vmatprep.subr.mxu0 0.0
    %1436 = vmatpush1.msra.mxu0 0.0
    %1437 = vmatprep.subr.mxu0 0.0
    %1438 = vmatpush1.msra.mxu0 0.0
    %1439 = vmatprep.subr.mxu0 0.0
    %1440 = vmatpush1.msra.mxu0 0.0
    %1441 = vmatprep.subr.mxu0 0.0
    %1442 = vmatpush1.msra.mxu0 0.0
    %1443 = vmatprep.subr.mxu0 0.0
    %1444 = vmatpush1.msra.mxu0 0.0
    %1445 = vmatprep.subr.mxu0 0.0
    %1446 = vmatpush1.msra.mxu0 0.0
    %1447 = vmatprep.subr.mxu0 0.0
    %1448 = vmatpush1.msra.mxu0 0.0
    %1449 = vmatprep.subr.mxu0 0.0
    %1450 = vmatpush1.msra.mxu0 0.0
    %1451 = vmatprep.subr.mxu0 0.0
    %1452 = vmatpush1.msra.mxu0 0.0
    %1453 = vmatprep.subr.mxu0 0.0
    %1454 = vmatpush1.msra.mxu0 0.0
    %1455 = vmatprep.mubr.f32.mxu0 0.0
    %v1456 = vand.u32 %v759, 4294901760
    %1457 = vmatmul.mubr.f32.gmra.mrb[0].mxu0 %v1456
    %v1458 = vpop.f32.mrb[0].mxu0
    %v1459 = vadd.f32 %v1366, %v1458
    %v1460 = vpop.f32.mrb[0].mxu0
    %1461 = vmatprep.mubr.f32.mxu0 0.0
    %v1462 = vand.u32 %v765, 4294901760
    %1463 = vmatmul.mubr.f32.gmra.mrb[0].mxu0 %v1462
    %v1464 = vpop.f32.mrb[0].mxu0
    %v1465 = vadd.f32 %v1372, %v1464
    %v1466 = vpop.f32.mrb[0].mxu0
    %1467 = vdwg.mxu0
    %1468 = vmatprep.subr.mxu0 0.0
    %v1469 = vand.u32 %v759, 4294901760
    %1470 = vmatpush1.xpose.msra.mxu0 %v1469
    %1471 = vmatprep.subr.mxu0 0.0
    %v1472 = vand.u32 %v765, 4294901760
    %1473 = vmatpush1.xpose.msra.mxu0 %v1472
    %1474 = vmatprep.subr.mxu0 0.0
    %1475 = vmatpush1.xpose.msra.mxu0 0.0
    %1476 = vmatprep.subr.mxu0 0.0
    %1477 = vmatpush1.xpose.msra.mxu0 0.0
    %1478 = vmatprep.subr.mxu0 0.0
    %1479 = vmatpush1.xpose.msra.mxu0 0.0
    %1480 = vmatprep.subr.mxu0 0.0
    %1481 = vmatpush1.xpose.msra.mxu0 0.0
    %1482 = vmatprep.subr.mxu0 0.0
    %1483 = vmatpush1.xpose.msra.mxu0 0.0
    %1484 = vmatprep.subr.mxu0 0.0
    %1485 = vmatpush1.xpose.msra.mxu0 0.0
    %1486 = vmatprep.subr.mxu0 0.0
    %1487 = vmatpush1.xpose.msra.mxu0 0.0
    %1488 = vmatprep.subr.mxu0 0.0
    %1489 = vmatpush1.xpose.msra.mxu0 0.0
    %1490 = vmatprep.subr.mxu0 0.0
    %1491 = vmatpush1.xpose.msra.mxu0 0.0
    %1492 = vmatprep.subr.mxu0 0.0
    %1493 = vmatpush1.xpose.msra.mxu0 0.0
    %1494 = vmatprep.subr.mxu0 0.0
    %1495 = vmatpush1.xpose.msra.mxu0 0.0
    %1496 = vmatprep.subr.mxu0 0.0
    %1497 = vmatpush1.xpose.msra.mxu0 0.0
    %1498 = vmatprep.subr.mxu0 0.0
    %1499 = vmatpush1.xpose.msra.mxu0 0.0
    %1500 = vmatprep.subr.mxu0 0.0
    %1501 = vmatpush1.xpose.msra.mxu0 0.0
    %1502 = vmatprep.subr.mxu0 0.0
    %1503 = vmatpush1.xpose.msra.mxu0 0.0
    %1504 = vmatprep.subr.mxu0 0.0
    %1505 = vmatpush1.xpose.msra.mxu0 0.0
    %1506 = vmatprep.subr.mxu0 0.0
    %1507 = vmatpush1.xpose.msra.mxu0 0.0
    %1508 = vmatprep.subr.mxu0 0.0
    %1509 = vmatpush1.xpose.msra.mxu0 0.0
    %1510 = vmatprep.subr.mxu0 0.0
    %1511 = vmatpush1.xpose.msra.mxu0 0.0
    %1512 = vmatprep.subr.mxu0 0.0
    %1513 = vmatpush1.xpose.msra.mxu0 0.0
    %1514 = vmatprep.subr.mxu0 0.0
    %1515 = vmatpush1.xpose.msra.mxu0 0.0
    %1516 = vmatprep.subr.mxu0 0.0
    %1517 = vmatpush1.xpose.msra.mxu0 0.0
    %1518 = vmatprep.subr.mxu0 0.0
    %1519 = vmatpush1.xpose.msra.mxu0 0.0
    %1520 = vmatprep.subr.mxu0 0.0
    %1521 = vmatpush1.xpose.msra.mxu0 0.0
    %1522 = vmatprep.subr.mxu0 0.0
    %1523 = vmatpush1.xpose.msra.mxu0 0.0
    %1524 = vmatprep.subr.mxu0 0.0
    %1525 = vmatpush1.xpose.msra.mxu0 0.0
    %1526 = vmatprep.subr.mxu0 0.0
    %1527 = vmatpush1.xpose.msra.mxu0 0.0
    %1528 = vmatprep.subr.mxu0 0.0
    %1529 = vmatpush1.xpose.msra.mxu0 0.0
    %1530 = vmatprep.subr.mxu0 0.0
    %1531 = vmatpush1.xpose.msra.mxu0 0.0
    %1532 = vmatprep.subr.mxu0 0.0
    %1533 = vmatpush1.xpose.msra.mxu0 0.0
    %1534 = vmatprep.mubr.f32.mxu0 0.0
    %v1535 = vand.u32 %v1459, 4294901760
    %v1536 = vsub.f32 %v1459, %v1535
    %v1537 = vand.u32 %v1536, 4294901760
    %v1538 = vsub.f32 %v1536, %v1537
    %v1539 = vand.u32 %v1538, 4294901760
    %1540 = vmatmul.mubr.f32.gmra.mrb[0].mxu0 %v1539
    %v1541 = vpop.f32.mrb[0].mxu0
    %v1542 = vadd.f32 0.0, %v1541
    %v1543 = vpop.f32.mrb[0].mxu0
    %1544 = vmatprep.mubr.f32.mxu0 0.0
    %v1545 = vand.u32 %v1465, 4294901760
    %v1546 = vsub.f32 %v1465, %v1545
    %v1547 = vand.u32 %v1546, 4294901760
    %v1548 = vsub.f32 %v1546, %v1547
    %v1549 = vand.u32 %v1548, 4294901760
    %1550 = vmatmul.mubr.f32.gmra.mrb[0].mxu0 %v1549
    %v1551 = vpop.f32.mrb[0].mxu0
    %v1552 = vadd.f32 0.0, %v1551
    %v1553 = vpop.f32.mrb[0].mxu0
    %1554 = vdwg.mxu0
    %1555 = vmatprep.subr.mxu0 0.0
    %v1556 = vand.u32 %v759, 4294901760
    %v1557 = vsub.f32 %v759, %v1556
    %v1558 = vand.u32 %v1557, 4294901760
    %v1559 = vsub.f32 %v1557, %v1558
    %v1560 = vand.u32 %v1559, 4294901760
    %1561 = vmatpush1.xpose.msra.mxu0 %v1560
    %1562 = vmatprep.subr.mxu0 0.0
    %v1563 = vand.u32 %v765, 4294901760
    %v1564 = vsub.f32 %v765, %v1563
    %v1565 = vand.u32 %v1564, 4294901760
    %v1566 = vsub.f32 %v1564, %v1565
    %v1567 = vand.u32 %v1566, 4294901760
    %1568 = vmatpush1.xpose.msra.mxu0 %v1567
    %1569 = vmatprep.subr.mxu0 0.0
    %1570 = vmatpush1.xpose.msra.mxu0 0.0
    %1571 = vmatprep.subr.mxu0 0.0
    %1572 = vmatpush1.xpose.msra.mxu0 0.0
    %1573 = vmatprep.subr.mxu0 0.0
    %1574 = vmatpush1.xpose.msra.mxu0 0.0
    %1575 = vmatprep.subr.mxu0 0.0
    %1576 = vmatpush1.xpose.msra.mxu0 0.0
    %1577 = vmatprep.subr.mxu0 0.0
    %1578 = vmatpush1.xpose.msra.mxu0 0.0
    %1579 = vmatprep.subr.mxu0 0.0
    %1580 = vmatpush1.xpose.msra.mxu0 0.0
    %1581 = vmatprep.subr.mxu0 0.0
    %1582 = vmatpush1.xpose.msra.mxu0 0.0
    %1583 = vmatprep.subr.mxu0 0.0
    %1584 = vmatpush1.xpose.msra.mxu0 0.0
    %1585 = vmatprep.subr.mxu0 0.0
    %1586 = vmatpush1.xpose.msra.mxu0 0.0
    %1587 = vmatprep.subr.mxu0 0.0
    %1588 = vmatpush1.xpose.msra.mxu0 0.0
    %1589 = vmatprep.subr.mxu0 0.0
    %1590 = vmatpush1.xpose.msra.mxu0 0.0
    %1591 = vmatprep.subr.mxu0 0.0
    %1592 = vmatpush1.xpose.msra.mxu0 0.0
    %1593 = vmatprep.subr.mxu0 0.0
    %1594 = vmatpush1.xpose.msra.mxu0 0.0
    %1595 = vmatprep.subr.mxu0 0.0
    %1596 = vmatpush1.xpose.msra.mxu0 0.0
    %1597 = vmatprep.subr.mxu0 0.0
    %1598 = vmatpush1.xpose.msra.mxu0 0.0
    %1599 = vmatprep.subr.mxu0 0.0
    %1600 = vmatpush1.xpose.msra.mxu0 0.0
    %1601 = vmatprep.subr.mxu0 0.0
    %1602 = vmatpush1.xpose.msra.mxu0 0.0
    %1603 = vmatprep.subr.mxu0 0.0
    %1604 = vmatpush1.xpose.msra.mxu0 0.0
    %1605 = vmatprep.subr.mxu0 0.0
    %1606 = vmatpush1.xpose.msra.mxu0 0.0
    %1607 = vmatprep.subr.mxu0 0.0
    %1608 = vmatpush1.xpose.msra.mxu0 0.0
    %1609 = vmatprep.subr.mxu0 0.0
    %1610 = vmatpush1.xpose.msra.mxu0 0.0
    %1611 = vmatprep.subr.mxu0 0.0
    %1612 = vmatpush1.xpose.msra.mxu0 0.0
    %1613 = vmatprep.subr.mxu0 0.0
    %1614 = vmatpush1.xpose.msra.mxu0 0.0
    %1615 = vmatprep.subr.mxu0 0.0
    %1616 = vmatpush1.xpose.msra.mxu0 0.0
    %1617 = vmatprep.subr.mxu0 0.0
    %1618 = vmatpush1.xpose.msra.mxu0 0.0
    %1619 = vmatprep.subr.mxu0 0.0
    %1620 = vmatpush1.xpose.msra.mxu0 0.0
    %1621 = vmatprep.subr.mxu0 0.0
    %1622 = vmatpush1.xpose.msra.mxu0 0.0
    %1623 = vmatprep.subr.mxu0 0.0
    %1624 = vmatpush1.xpose.msra.mxu0 0.0
    %1625 = vmatprep.subr.mxu0 0.0
    %1626 = vmatpush1.xpose.msra.mxu0 0.0
    %1627 = vmatprep.subr.mxu0 0.0
    %1628 = vmatpush1.xpose.msra.mxu0 0.0
    %1629 = vmatprep.mubr.f32.mxu0 0.0
    %v1630 = vand.u32 %v1459, 4294901760
    %1631 = vmatmul.mubr.f32.gmra.mrb[0].mxu0 %v1630
    %v1632 = vpop.f32.mrb[0].mxu0
    %v1633 = vadd.f32 %v1542, %v1632
    %v1634 = vpop.f32.mrb[0].mxu0
    %1635 = vmatprep.mubr.f32.mxu0 0.0
    %v1636 = vand.u32 %v1465, 4294901760
    %1637 = vmatmul.mubr.f32.gmra.mrb[0].mxu0 %v1636
    %v1638 = vpop.f32.mrb[0].mxu0
    %v1639 = vadd.f32 %v1552, %v1638
    %v1640 = vpop.f32.mrb[0].mxu0
    %1641 = vdwg.mxu0
    %1642 = vmatprep.subr.mxu0 0.0
    %v1643 = vand.u32 %v759, 4294901760
    %v1644 = vsub.f32 %v759, %v1643
    %1645 = vmatpush1.xpose.msra.mxu0 %v1644
    %1646 = vmatprep.subr.mxu0 0.0
    %v1647 = vand.u32 %v765, 4294901760
    %v1648 = vsub.f32 %v765, %v1647
    %1649 = vmatpush1.xpose.msra.mxu0 %v1648
    %1650 = vmatprep.subr.mxu0 0.0
    %1651 = vmatpush1.xpose.msra.mxu0 0.0
    %1652 = vmatprep.subr.mxu0 0.0
    %1653 = vmatpush1.xpose.msra.mxu0 0.0
    %1654 = vmatprep.subr.mxu0 0.0
    %1655 = vmatpush1.xpose.msra.mxu0 0.0
    %1656 = vmatprep.subr.mxu0 0.0
    %1657 = vmatpush1.xpose.msra.mxu0 0.0
    %1658 = vmatprep.subr.mxu0 0.0
    %1659 = vmatpush1.xpose.msra.mxu0 0.0
    %1660 = vmatprep.subr.mxu0 0.0
    %1661 = vmatpush1.xpose.msra.mxu0 0.0
    %1662 = vmatprep.subr.mxu0 0.0
    %1663 = vmatpush1.xpose.msra.mxu0 0.0
    %1664 = vmatprep.subr.mxu0 0.0
    %1665 = vmatpush1.xpose.msra.mxu0 0.0
    %1666 = vmatprep.subr.mxu0 0.0
    %1667 = vmatpush1.xpose.msra.mxu0 0.0
    %1668 = vmatprep.subr.mxu0 0.0
    %1669 = vmatpush1.xpose.msra.mxu0 0.0
    %1670 = vmatprep.subr.mxu0 0.0
    %1671 = vmatpush1.xpose.msra.mxu0 0.0
    %1672 = vmatprep.subr.mxu0 0.0
    %1673 = vmatpush1.xpose.msra.mxu0 0.0
    %1674 = vmatprep.subr.mxu0 0.0
    %1675 = vmatpush1.xpose.msra.mxu0 0.0
    %1676 = vmatprep.subr.mxu0 0.0
    %1677 = vmatpush1.xpose.msra.mxu0 0.0
    %1678 = vmatprep.subr.mxu0 0.0
    %1679 = vmatpush1.xpose.msra.mxu0 0.0
    %1680 = vmatprep.subr.mxu0 0.0
    %1681 = vmatpush1.xpose.msra.mxu0 0.0
    %1682 = vmatprep.subr.mxu0 0.0
    %1683 = vmatpush1.xpose.msra.mxu0 0.0
    %1684 = vmatprep.subr.mxu0 0.0
    %1685 = vmatpush1.xpose.msra.mxu0 0.0
    %1686 = vmatprep.subr.mxu0 0.0
    %1687 = vmatpush1.xpose.msra.mxu0 0.0
    %1688 = vmatprep.subr.mxu0 0.0
    %1689 = vmatpush1.xpose.msra.mxu0 0.0
    %1690 = vmatprep.subr.mxu0 0.0
    %1691 = vmatpush1.xpose.msra.mxu0 0.0
    %1692 = vmatprep.subr.mxu0 0.0
    %1693 = vmatpush1.xpose.msra.mxu0 0.0
    %1694 = vmatprep.subr.mxu0 0.0
    %1695 = vmatpush1.xpose.msra.mxu0 0.0
    %1696 = vmatprep.subr.mxu0 0.0
    %1697 = vmatpush1.xpose.msra.mxu0 0.0
    %1698 = vmatprep.subr.mxu0 0.0
    %1699 = vmatpush1.xpose.msra.mxu0 0.0
    %1700 = vmatprep.subr.mxu0 0.0
    %1701 = vmatpush1.xpose.msra.mxu0 0.0
    %1702 = vmatprep.subr.mxu0 0.0
    %1703 = vmatpush1.xpose.msra.mxu0 0.0
    %1704 = vmatprep.subr.mxu0 0.0
    %1705 = vmatpush1.xpose.msra.mxu0 0.0
    %1706 = vmatprep.subr.mxu0 0.0
    %1707 = vmatpush1.xpose.msra.mxu0 0.0
    %1708 = vmatprep.subr.mxu0 0.0
    %1709 = vmatpush1.xpose.msra.mxu0 0.0
    %1710 = vmatprep.mubr.f32.mxu0 0.0
    %v1711 = vand.u32 %v1459, 4294901760
    %v1712 = vsub.f32 %v1459, %v1711
    %1713 = vmatmul.mubr.f32.gmra.mrb[0].mxu0 %v1712
    %v1714 = vpop.f32.mrb[0].mxu0
    %v1715 = vadd.f32 %v1633, %v1714
    %v1716 = vpop.f32.mrb[0].mxu0
    %1717 = vmatprep.mubr.f32.mxu0 0.0
    %v1718 = vand.u32 %v1465, 4294901760
    %v1719 = vsub.f32 %v1465, %v1718
    %1720 = vmatmul.mubr.f32.gmra.mrb[0].mxu0 %v1719
    %v1721 = vpop.f32.mrb[0].mxu0
    %v1722 = vadd.f32 %v1639, %v1721
    %v1723 = vpop.f32.mrb[0].mxu0
    %1724 = vdwg.mxu0
    %1725 = vmatprep.subr.mxu0 0.0
    %v1726 = vand.u32 %v759, 4294901760
    %1727 = vmatpush1.xpose.msra.mxu0 %v1726
    %1728 = vmatprep.subr.mxu0 0.0
    %v1729 = vand.u32 %v765, 4294901760
    %1730 = vmatpush1.xpose.msra.mxu0 %v1729
    %1731 = vmatprep.subr.mxu0 0.0
    %1732 = vmatpush1.xpose.msra.mxu0 0.0
    %1733 = vmatprep.subr.mxu0 0.0
    %1734 = vmatpush1.xpose.msra.mxu0 0.0
    %1735 = vmatprep.subr.mxu0 0.0
    %1736 = vmatpush1.xpose.msra.mxu0 0.0
    %1737 = vmatprep.subr.mxu0 0.0
    %1738 = vmatpush1.xpose.msra.mxu0 0.0
    %1739 = vmatprep.subr.mxu0 0.0
    %1740 = vmatpush1.xpose.msra.mxu0 0.0
    %1741 = vmatprep.subr.mxu0 0.0
    %1742 = vmatpush1.xpose.msra.mxu0 0.0
    %1743 = vmatprep.subr.mxu0 0.0
    %1744 = vmatpush1.xpose.msra.mxu0 0.0
    %1745 = vmatprep.subr.mxu0 0.0
    %1746 = vmatpush1.xpose.msra.mxu0 0.0
    %1747 = vmatprep.subr.mxu0 0.0
    %1748 = vmatpush1.xpose.msra.mxu0 0.0
    %1749 = vmatprep.subr.mxu0 0.0
    %1750 = vmatpush1.xpose.msra.mxu0 0.0
    %1751 = vmatprep.subr.mxu0 0.0
    %1752 = vmatpush1.xpose.msra.mxu0 0.0
    %1753 = vmatprep.subr.mxu0 0.0
    %1754 = vmatpush1.xpose.msra.mxu0 0.0
    %1755 = vmatprep.subr.mxu0 0.0
    %1756 = vmatpush1.xpose.msra.mxu0 0.0
    %1757 = vmatprep.subr.mxu0 0.0
    %1758 = vmatpush1.xpose.msra.mxu0 0.0
    %1759 = vmatprep.subr.mxu0 0.0
    %1760 = vmatpush1.xpose.msra.mxu0 0.0
    %1761 = vmatprep.subr.mxu0 0.0
    %1762 = vmatpush1.xpose.msra.mxu0 0.0
    %1763 = vmatprep.subr.mxu0 0.0
    %1764 = vmatpush1.xpose.msra.mxu0 0.0
    %1765 = vmatprep.subr.mxu0 0.0
    %1766 = vmatpush1.xpose.msra.mxu0 0.0
    %1767 = vmatprep.subr.mxu0 0.0
    %1768 = vmatpush1.xpose.msra.mxu0 0.0
    %1769 = vmatprep.subr.mxu0 0.0
    %1770 = vmatpush1.xpose.msra.mxu0 0.0
    %1771 = vmatprep.subr.mxu0 0.0
    %1772 = vmatpush1.xpose.msra.mxu0 0.0
    %1773 = vmatprep.subr.mxu0 0.0
    %1774 = vmatpush1.xpose.msra.mxu0 0.0
    %1775 = vmatprep.subr.mxu0 0.0
    %1776 = vmatpush1.xpose.msra.mxu0 0.0
    %1777 = vmatprep.subr.mxu0 0.0
    %1778 = vmatpush1.xpose.msra.mxu0 0.0
    %1779 = vmatprep.subr.mxu0 0.0
    %1780 = vmatpush1.xpose.msra.mxu0 0.0
    %1781 = vmatprep.subr.mxu0 0.0
    %1782 = vmatpush1.xpose.msra.mxu0 0.0
    %1783 = vmatprep.subr.mxu0 0.0
    %1784 = vmatpush1.xpose.msra.mxu0 0.0
    %1785 = vmatprep.subr.mxu0 0.0
    %1786 = vmatpush1.xpose.msra.mxu0 0.0
    %1787 = vmatprep.subr.mxu0 0.0
    %1788 = vmatpush1.xpose.msra.mxu0 0.0
    %1789 = vmatprep.subr.mxu0 0.0
    %1790 = vmatpush1.xpose.msra.mxu0 0.0
    %1791 = vmatprep.mubr.f32.mxu0 0.0
    %v1792 = vand.u32 %v1459, 4294901760
    %v1793 = vsub.f32 %v1459, %v1792
    %v1794 = vand.u32 %v1793, 4294901760
    %1795 = vmatmul.mubr.f32.gmra.mrb[0].mxu0 %v1794
    %v1796 = vpop.f32.mrb[0].mxu0
    %v1797 = vadd.f32 %v1715, %v1796
    %v1798 = vpop.f32.mrb[0].mxu0
    %1799 = vmatprep.mubr.f32.mxu0 0.0
    %v1800 = vand.u32 %v1465, 4294901760
    %v1801 = vsub.f32 %v1465, %v1800
    %v1802 = vand.u32 %v1801, 4294901760
    %1803 = vmatmul.mubr.f32.gmra.mrb[0].mxu0 %v1802
    %v1804 = vpop.f32.mrb[0].mxu0
    %v1805 = vadd.f32 %v1722, %v1804
    %v1806 = vpop.f32.mrb[0].mxu0
    %1807 = vdwg.mxu0
    %1808 = vmatprep.subr.mxu0 0.0
    %v1809 = vand.u32 %v759, 4294901760
    %v1810 = vsub.f32 %v759, %v1809
    %v1811 = vand.u32 %v1810, 4294901760
    %1812 = vmatpush1.xpose.msra.mxu0 %v1811
    %1813 = vmatprep.subr.mxu0 0.0
    %v1814 = vand.u32 %v765, 4294901760
    %v1815 = vsub.f32 %v765, %v1814
    %v1816 = vand.u32 %v1815, 4294901760
    %1817 = vmatpush1.xpose.msra.mxu0 %v1816
    %1818 = vmatprep.subr.mxu0 0.0
    %1819 = vmatpush1.xpose.msra.mxu0 0.0
    %1820 = vmatprep.subr.mxu0 0.0
    %1821 = vmatpush1.xpose.msra.mxu0 0.0
    %1822 = vmatprep.subr.mxu0 0.0
    %1823 = vmatpush1.xpose.msra.mxu0 0.0
    %1824 = vmatprep.subr.mxu0 0.0
    %1825 = vmatpush1.xpose.msra.mxu0 0.0
    %1826 = vmatprep.subr.mxu0 0.0
    %1827 = vmatpush1.xpose.msra.mxu0 0.0
    %1828 = vmatprep.subr.mxu0 0.0
    %1829 = vmatpush1.xpose.msra.mxu0 0.0
    %1830 = vmatprep.subr.mxu0 0.0
    %1831 = vmatpush1.xpose.msra.mxu0 0.0
    %1832 = vmatprep.subr.mxu0 0.0
    %1833 = vmatpush1.xpose.msra.mxu0 0.0
    %1834 = vmatprep.subr.mxu0 0.0
    %1835 = vmatpush1.xpose.msra.mxu0 0.0
    %1836 = vmatprep.subr.mxu0 0.0
    %1837 = vmatpush1.xpose.msra.mxu0 0.0
    %1838 = vmatprep.subr.mxu0 0.0
    %1839 = vmatpush1.xpose.msra.mxu0 0.0
    %1840 = vmatprep.subr.mxu0 0.0
    %1841 = vmatpush1.xpose.msra.mxu0 0.0
    %1842 = vmatprep.subr.mxu0 0.0
    %1843 = vmatpush1.xpose.msra.mxu0 0.0
    %1844 = vmatprep.subr.mxu0 0.0
    %1845 = vmatpush1.xpose.msra.mxu0 0.0
    %1846 = vmatprep.subr.mxu0 0.0
    %1847 = vmatpush1.xpose.msra.mxu0 0.0
    %1848 = vmatprep.subr.mxu0 0.0
    %1849 = vmatpush1.xpose.msra.mxu0 0.0
    %1850 = vmatprep.subr.mxu0 0.0
    %1851 = vmatpush1.xpose.msra.mxu0 0.0
    %1852 = vmatprep.subr.mxu0 0.0
    %1853 = vmatpush1.xpose.msra.mxu0 0.0
    %1854 = vmatprep.subr.mxu0 0.0
    %1855 = vmatpush1.xpose.msra.mxu0 0.0
    %1856 = vmatprep.subr.mxu0 0.0
    %1857 = vmatpush1.xpose.msra.mxu0 0.0
    %1858 = vmatprep.subr.mxu0 0.0
    %1859 = vmatpush1.xpose.msra.mxu0 0.0
    %1860 = vmatprep.subr.mxu0 0.0
    %1861 = vmatpush1.xpose.msra.mxu0 0.0
    %1862 = vmatprep.subr.mxu0 0.0
    %1863 = vmatpush1.xpose.msra.mxu0 0.0
    %1864 = vmatprep.subr.mxu0 0.0
    %1865 = vmatpush1.xpose.msra.mxu0 0.0
    %1866 = vmatprep.subr.mxu0 0.0
    %1867 = vmatpush1.xpose.msra.mxu0 0.0
    %1868 = vmatprep.subr.mxu0 0.0
    %1869 = vmatpush1.xpose.msra.mxu0 0.0
    %1870 = vmatprep.subr.mxu0 0.0
    %1871 = vmatpush1.xpose.msra.mxu0 0.0
    %1872 = vmatprep.subr.mxu0 0.0
    %1873 = vmatpush1.xpose.msra.mxu0 0.0
    %1874 = vmatprep.subr.mxu0 0.0
    %1875 = vmatpush1.xpose.msra.mxu0 0.0
    %1876 = vmatprep.subr.mxu0 0.0
    %1877 = vmatpush1.xpose.msra.mxu0 0.0
    %1878 = vmatprep.mubr.f32.mxu0 0.0
    %v1879 = vand.u32 %v1459, 4294901760
    %1880 = vmatmul.mubr.f32.gmra.mrb[0].mxu0 %v1879
    %v1881 = vpop.f32.mrb[0].mxu0
    %v1882 = vadd.f32 %v1797, %v1881
    %v1883 = vpop.f32.mrb[0].mxu0
    %1884 = vmatprep.mubr.f32.mxu0 0.0
    %v1885 = vand.u32 %v1465, 4294901760
    %1886 = vmatmul.mubr.f32.gmra.mrb[0].mxu0 %v1885
    %v1887 = vpop.f32.mrb[0].mxu0
    %v1888 = vadd.f32 %v1805, %v1887
    %v1889 = vpop.f32.mrb[0].mxu0
    %1890 = vdwg.mxu0
    %1891 = vmatprep.subr.mxu0 0.0
    %v1892 = vand.u32 %v759, 4294901760
    %1893 = vmatpush1.xpose.msra.mxu0 %v1892
    %1894 = vmatprep.subr.mxu0 0.0
    %v1895 = vand.u32 %v765, 4294901760
    %1896 = vmatpush1.xpose.msra.mxu0 %v1895
    %1897 = vmatprep.subr.mxu0 0.0
    %1898 = vmatpush1.xpose.msra.mxu0 0.0
    %1899 = vmatprep.subr.mxu0 0.0
    %1900 = vmatpush1.xpose.msra.mxu0 0.0
    %1901 = vmatprep.subr.mxu0 0.0
    %1902 = vmatpush1.xpose.msra.mxu0 0.0
    %1903 = vmatprep.subr.mxu0 0.0
    %1904 = vmatpush1.xpose.msra.mxu0 0.0
    %1905 = vmatprep.subr.mxu0 0.0
    %1906 = vmatpush1.xpose.msra.mxu0 0.0
    %1907 = vmatprep.subr.mxu0 0.0
    %1908 = vmatpush1.xpose.msra.mxu0 0.0
    %1909 = vmatprep.subr.mxu0 0.0
    %1910 = vmatpush1.xpose.msra.mxu0 0.0
    %1911 = vmatprep.subr.mxu0 0.0
    %1912 = vmatpush1.xpose.msra.mxu0 0.0
    %1913 = vmatprep.subr.mxu0 0.0
    %1914 = vmatpush1.xpose.msra.mxu0 0.0
    %1915 = vmatprep.subr.mxu0 0.0
    %1916 = vmatpush1.xpose.msra.mxu0 0.0
    %1917 = vmatprep.subr.mxu0 0.0
    %1918 = vmatpush1.xpose.msra.mxu0 0.0
    %1919 = vmatprep.subr.mxu0 0.0
    %1920 = vmatpush1.xpose.msra.mxu0 0.0
    %1921 = vmatprep.subr.mxu0 0.0
    %1922 = vmatpush1.xpose.msra.mxu0 0.0
    %1923 = vmatprep.subr.mxu0 0.0
    %1924 = vmatpush1.xpose.msra.mxu0 0.0
    %1925 = vmatprep.subr.mxu0 0.0
    %1926 = vmatpush1.xpose.msra.mxu0 0.0
    %1927 = vmatprep.subr.mxu0 0.0
    %1928 = vmatpush1.xpose.msra.mxu0 0.0
    %1929 = vmatprep.subr.mxu0 0.0
    %1930 = vmatpush1.xpose.msra.mxu0 0.0
    %1931 = vmatprep.subr.mxu0 0.0
    %1932 = vmatpush1.xpose.msra.mxu0 0.0
    %1933 = vmatprep.subr.mxu0 0.0
    %1934 = vmatpush1.xpose.msra.mxu0 0.0
    %1935 = vmatprep.subr.mxu0 0.0
    %1936 = vmatpush1.xpose.msra.mxu0 0.0
    %1937 = vmatprep.subr.mxu0 0.0
    %1938 = vmatpush1.xpose.msra.mxu0 0.0
    %1939 = vmatprep.subr.mxu0 0.0
    %1940 = vmatpush1.xpose.msra.mxu0 0.0
    %1941 = vmatprep.subr.mxu0 0.0
    %1942 = vmatpush1.xpose.msra.mxu0 0.0
    %1943 = vmatprep.subr.mxu0 0.0
    %1944 = vmatpush1.xpose.msra.mxu0 0.0
    %1945 = vmatprep.subr.mxu0 0.0
    %1946 = vmatpush1.xpose.msra.mxu0 0.0
    %1947 = vmatprep.subr.mxu0 0.0
    %1948 = vmatpush1.xpose.msra.mxu0 0.0
    %1949 = vmatprep.subr.mxu0 0.0
    %1950 = vmatpush1.xpose.msra.mxu0 0.0
    %1951 = vmatprep.subr.mxu0 0.0
    %1952 = vmatpush1.xpose.msra.mxu0 0.0
    %1953 = vmatprep.subr.mxu0 0.0
    %1954 = vmatpush1.xpose.msra.mxu0 0.0
    %1955 = vmatprep.subr.mxu0 0.0
    %1956 = vmatpush1.xpose.msra.mxu0 0.0
    %1957 = vmatprep.mubr.f32.mxu0 0.0
    %v1958 = vand.u32 %v1459, 4294901760
    %1959 = vmatmul.mubr.f32.gmra.mrb[0].mxu0 %v1958
    %v1960 = vpop.f32.mrb[0].mxu0
    %v1961 = vadd.f32 %v1882, %v1960
    %v1962 = vpop.f32.mrb[0].mxu0
    %1963 = vmatprep.mubr.f32.mxu0 0.0
    %v1964 = vand.u32 %v1465, 4294901760
    %1965 = vmatmul.mubr.f32.gmra.mrb[0].mxu0 %v1964
    %v1966 = vpop.f32.mrb[0].mxu0
    %v1967 = vadd.f32 %v1888, %v1966
    %v1968 = vpop.f32.mrb[0].mxu0
    %1969 = vdwg.mxu0
    %vm1970 = vcmask 130048
    %v1971 = vsel %vm1970, %v1961, -inf
    %1972 = vmax.xlane.f32.xlu0 %v1971
    %v1973 = vpop.xlane.xlu0 %1972
    %v1974 = vsel %vm1970, %v1967, -inf
    %1975 = vmax.xlane.f32.xlu0 %v1974
    %v1976 = vpop.xlane.xlu0 %1975
    %v1977 = vsub.f32 %v1961, %v1973
    %v1978 = vsub.f32 %v1967, %v1976
    %v1979 = vmul.f32 %v1977, 1.442695
    %v1980 = vpow.pop %v1979
    %v1981 = vmul.f32 %v1978, 1.442695
    %v1982 = vpow.pop %v1981
    %v1983 = vsel %vm1970, %v1980, 0.0
    %1984 = vadd.xlane.f32.xlu0 %v1983
    %v1985 = vpop.xlane.xlu0 %1984
    %v1986 = vsel %vm1970, %v1982, 0.0
    %1987 = vadd.xlane.f32.xlu0 %v1986
    %v1988 = vpop.xlane.xlu0 %1987
    %v1989 = vrcp.pop %v1985
    %v1990 = vmul.f32 1.0, %v1989
    %v1991 = vrcp.pop %v1988
    %v1992 = vmul.f32 1.0, %v1991
    %v1993 = vmul.f32 %v1980, %v1990
    %v1994 = vmul.f32 %v1982, %v1992
    %v1996 = vsel %vm1970, %v1993, 0
    %v1999 = vsel %vm1970, %v1994, 0
    %2001 = vmatprep.subr.mxu0 0.0
    %v2002 = vand.u32 %v759, 4294901760
    %2003 = vmatpush1.msra.mxu0 %v2002
    %2004 = vmatprep.subr.mxu0 0.0
    %v2005 = vand.u32 %v765, 4294901760
    %2006 = vmatpush1.msra.mxu0 %v2005
    %2007 = vmatprep.subr.mxu0 0.0
    %2008 = vmatpush1.msra.mxu0 0.0
    %2009 = vmatprep.subr.mxu0 0.0
    %2010 = vmatpush1.msra.mxu0 0.0
    %2011 = vmatprep.subr.mxu0 0.0
    %2012 = vmatpush1.msra.mxu0 0.0
    %2013 = vmatprep.subr.mxu0 0.0
    %2014 = vmatpush1.msra.mxu0 0.0
    %2015 = vmatprep.subr.mxu0 0.0
    %2016 = vmatpush1.msra.mxu0 0.0
    %2017 = vmatprep.subr.mxu0 0.0
    %2018 = vmatpush1.msra.mxu0 0.0
    %2019 = vmatprep.subr.mxu0 0.0
    %2020 = vmatpush1.msra.mxu0 0.0
    %2021 = vmatprep.subr.mxu0 0.0
    %2022 = vmatpush1.msra.mxu0 0.0
    %2023 = vmatprep.subr.mxu0 0.0
    %2024 = vmatpush1.msra.mxu0 0.0
    %2025 = vmatprep.subr.mxu0 0.0
    %2026 = vmatpush1.msra.mxu0 0.0
    %2027 = vmatprep.subr.mxu0 0.0
    %2028 = vmatpush1.msra.mxu0 0.0
    %2029 = vmatprep.subr.mxu0 0.0
    %2030 = vmatpush1.msra.mxu0 0.0
    %2031 = vmatprep.subr.mxu0 0.0
    %2032 = vmatpush1.msra.mxu0 0.0
    %2033 = vmatprep.subr.mxu0 0.0
    %2034 = vmatpush1.msra.mxu0 0.0
    %2035 = vmatprep.subr.mxu0 0.0
    %2036 = vmatpush1.msra.mxu0 0.0
    %2037 = vmatprep.subr.mxu0 0.0
    %2038 = vmatpush1.msra.mxu0 0.0
    %2039 = vmatprep.subr.mxu0 0.0
    %2040 = vmatpush1.msra.mxu0 0.0
    %2041 = vmatprep.subr.mxu0 0.0
    %2042 = vmatpush1.msra.mxu0 0.0
    %2043 = vmatprep.subr.mxu0 0.0
    %2044 = vmatpush1.msra.mxu0 0.0
    %2045 = vmatprep.subr.mxu0 0.0
    %2046 = vmatpush1.msra.mxu0 0.0
    %2047 = vmatprep.subr.mxu0 0.0
    %2048 = vmatpush1.msra.mxu0 0.0
    %2049 = vmatprep.subr.mxu0 0.0
    %2050 = vmatpush1.msra.mxu0 0.0
    %2051 = vmatprep.subr.mxu0 0.0
    %2052 = vmatpush1.msra.mxu0 0.0
    %2053 = vmatprep.subr.mxu0 0.0
    %2054 = vmatpush1.msra.mxu0 0.0
    %2055 = vmatprep.subr.mxu0 0.0
    %2056 = vmatpush1.msra.mxu0 0.0
    %2057 = vmatprep.subr.mxu0 0.0
    %2058 = vmatpush1.msra.mxu0 0.0
    %2059 = vmatprep.subr.mxu0 0.0
    %2060 = vmatpush1.msra.mxu0 0.0
    %2061 = vmatprep.subr.mxu0 0.0
    %2062 = vmatpush1.msra.mxu0 0.0
    %2063 = vmatprep.subr.mxu0 0.0
    %2064 = vmatpush1.msra.mxu0 0.0
    %2065 = vmatprep.subr.mxu0 0.0
    %2066 = vmatpush1.msra.mxu0 0.0
    %2067 = vmatprep.mubr.f32.mxu0 0.0
    %v2068 = vand.u32 %v1996, 4294901760
    %v2069 = vsub.f32 %v1996, %v2068
    %v2070 = vand.u32 %v2069, 4294901760
    %v2071 = vsub.f32 %v2069, %v2070
    %v2072 = vand.u32 %v2071, 4294901760
    %2073 = vmatmul.mubr.f32.gmra.mrb[0].mxu0 %v2072
    %v2074 = vpop.f32.mrb[0].mxu0
    %v2075 = vadd.f32 0.0, %v2074
    %v2076 = vpop.f32.mrb[0].mxu0
    %2077 = vmatprep.mubr.f32.mxu0 0.0
    %v2078 = vand.u32 %v1999, 4294901760
    %v2079 = vsub.f32 %v1999, %v2078
    %v2080 = vand.u32 %v2079, 4294901760
    %v2081 = vsub.f32 %v2079, %v2080
    %v2082 = vand.u32 %v2081, 4294901760
    %2083 = vmatmul.mubr.f32.gmra.mrb[0].mxu0 %v2082
    %v2084 = vpop.f32.mrb[0].mxu0
    %v2085 = vadd.f32 0.0, %v2084
    %v2086 = vpop.f32.mrb[0].mxu0
    %2087 = vdwg.mxu0
    %2088 = vmatprep.subr.mxu0 0.0
    %v2089 = vand.u32 %v759, 4294901760
    %v2090 = vsub.f32 %v759, %v2089
    %v2091 = vand.u32 %v2090, 4294901760
    %v2092 = vsub.f32 %v2090, %v2091
    %v2093 = vand.u32 %v2092, 4294901760
    %2094 = vmatpush1.msra.mxu0 %v2093
    %2095 = vmatprep.subr.mxu0 0.0
    %v2096 = vand.u32 %v765, 4294901760
    %v2097 = vsub.f32 %v765, %v2096
    %v2098 = vand.u32 %v2097, 4294901760
    %v2099 = vsub.f32 %v2097, %v2098
    %v2100 = vand.u32 %v2099, 4294901760
    %2101 = vmatpush1.msra.mxu0 %v2100
    %2102 = vmatprep.subr.mxu0 0.0
    %2103 = vmatpush1.msra.mxu0 0.0
    %2104 = vmatprep.subr.mxu0 0.0
    %2105 = vmatpush1.msra.mxu0 0.0
    %2106 = vmatprep.subr.mxu0 0.0
    %2107 = vmatpush1.msra.mxu0 0.0
    %2108 = vmatprep.subr.mxu0 0.0
    %2109 = vmatpush1.msra.mxu0 0.0
    %2110 = vmatprep.subr.mxu0 0.0
    %2111 = vmatpush1.msra.mxu0 0.0
    %2112 = vmatprep.subr.mxu0 0.0
    %2113 = vmatpush1.msra.mxu0 0.0
    %2114 = vmatprep.subr.mxu0 0.0
    %2115 = vmatpush1.msra.mxu0 0.0
    %2116 = vmatprep.subr.mxu0 0.0
    %2117 = vmatpush1.msra.mxu0 0.0
    %2118 = vmatprep.subr.mxu0 0.0
    %2119 = vmatpush1.msra.mxu0 0.0
    %2120 = vmatprep.subr.mxu0 0.0
    %2121 = vmatpush1.msra.mxu0 0.0
    %2122 = vmatprep.subr.mxu0 0.0
    %2123 = vmatpush1.msra.mxu0 0.0
    %2124 = vmatprep.subr.mxu0 0.0
    %2125 = vmatpush1.msra.mxu0 0.0
    %2126 = vmatprep.subr.mxu0 0.0
    %2127 = vmatpush1.msra.mxu0 0.0
    %2128 = vmatprep.subr.mxu0 0.0
    %2129 = vmatpush1.msra.mxu0 0.0
    %2130 = vmatprep.subr.mxu0 0.0
    %2131 = vmatpush1.msra.mxu0 0.0
    %2132 = vmatprep.subr.mxu0 0.0
    %2133 = vmatpush1.msra.mxu0 0.0
    %2134 = vmatprep.subr.mxu0 0.0
    %2135 = vmatpush1.msra.mxu0 0.0
    %2136 = vmatprep.subr.mxu0 0.0
    %2137 = vmatpush1.msra.mxu0 0.0
    %2138 = vmatprep.subr.mxu0 0.0
    %2139 = vmatpush1.msra.mxu0 0.0
    %2140 = vmatprep.subr.mxu0 0.0
    %2141 = vmatpush1.msra.mxu0 0.0
    %2142 = vmatprep.subr.mxu0 0.0
    %2143 = vmatpush1.msra.mxu0 0.0
    %2144 = vmatprep.subr.mxu0 0.0
    %2145 = vmatpush1.msra.mxu0 0.0
    %2146 = vmatprep.subr.mxu0 0.0
    %2147 = vmatpush1.msra.mxu0 0.0
    %2148 = vmatprep.subr.mxu0 0.0
    %2149 = vmatpush1.msra.mxu0 0.0
    %2150 = vmatprep.subr.mxu0 0.0
    %2151 = vmatpush1.msra.mxu0 0.0
    %2152 = vmatprep.subr.mxu0 0.0
    %2153 = vmatpush1.msra.mxu0 0.0
    %2154 = vmatprep.subr.mxu0 0.0
    %2155 = vmatpush1.msra.mxu0 0.0
    %2156 = vmatprep.subr.mxu0 0.0
    %2157 = vmatpush1.msra.mxu0 0.0
    %2158 = vmatprep.subr.mxu0 0.0
    %2159 = vmatpush1.msra.mxu0 0.0
    %2160 = vmatprep.subr.mxu0 0.0
    %2161 = vmatpush1.msra.mxu0 0.0
    %2162 = vmatprep.mubr.f32.mxu0 0.0
    %v2163 = vand.u32 %v1996, 4294901760
    %2164 = vmatmul.mubr.f32.gmra.mrb[0].mxu0 %v2163
    %v2165 = vpop.f32.mrb[0].mxu0
    %v2166 = vadd.f32 %v2075, %v2165
    %v2167 = vpop.f32.mrb[0].mxu0
    %2168 = vmatprep.mubr.f32.mxu0 0.0
    %v2169 = vand.u32 %v1999, 4294901760
    %2170 = vmatmul.mubr.f32.gmra.mrb[0].mxu0 %v2169
    %v2171 = vpop.f32.mrb[0].mxu0
    %v2172 = vadd.f32 %v2085, %v2171
    %v2173 = vpop.f32.mrb[0].mxu0
    %2174 = vdwg.mxu0
    %2175 = vmatprep.subr.mxu0 0.0
    %v2176 = vand.u32 %v759, 4294901760
    %v2177 = vsub.f32 %v759, %v2176
    %2178 = vmatpush1.msra.mxu0 %v2177
    %2179 = vmatprep.subr.mxu0 0.0
    %v2180 = vand.u32 %v765, 4294901760
    %v2181 = vsub.f32 %v765, %v2180
    %2182 = vmatpush1.msra.mxu0 %v2181
    %2183 = vmatprep.subr.mxu0 0.0
    %2184 = vmatpush1.msra.mxu0 0.0
    %2185 = vmatprep.subr.mxu0 0.0
    %2186 = vmatpush1.msra.mxu0 0.0
    %2187 = vmatprep.subr.mxu0 0.0
    %2188 = vmatpush1.msra.mxu0 0.0
    %2189 = vmatprep.subr.mxu0 0.0
    %2190 = vmatpush1.msra.mxu0 0.0
    %2191 = vmatprep.subr.mxu0 0.0
    %2192 = vmatpush1.msra.mxu0 0.0
    %2193 = vmatprep.subr.mxu0 0.0
    %2194 = vmatpush1.msra.mxu0 0.0
    %2195 = vmatprep.subr.mxu0 0.0
    %2196 = vmatpush1.msra.mxu0 0.0
    %2197 = vmatprep.subr.mxu0 0.0
    %2198 = vmatpush1.msra.mxu0 0.0
    %2199 = vmatprep.subr.mxu0 0.0
    %2200 = vmatpush1.msra.mxu0 0.0
    %2201 = vmatprep.subr.mxu0 0.0
    %2202 = vmatpush1.msra.mxu0 0.0
    %2203 = vmatprep.subr.mxu0 0.0
    %2204 = vmatpush1.msra.mxu0 0.0
    %2205 = vmatprep.subr.mxu0 0.0
    %2206 = vmatpush1.msra.mxu0 0.0
    %2207 = vmatprep.subr.mxu0 0.0
    %2208 = vmatpush1.msra.mxu0 0.0
    %2209 = vmatprep.subr.mxu0 0.0
    %2210 = vmatpush1.msra.mxu0 0.0
    %2211 = vmatprep.subr.mxu0 0.0
    %2212 = vmatpush1.msra.mxu0 0.0
    %2213 = vmatprep.subr.mxu0 0.0
    %2214 = vmatpush1.msra.mxu0 0.0
    %2215 = vmatprep.subr.mxu0 0.0
    %2216 = vmatpush1.msra.mxu0 0.0
    %2217 = vmatprep.subr.mxu0 0.0
    %2218 = vmatpush1.msra.mxu0 0.0
    %2219 = vmatprep.subr.mxu0 0.0
    %2220 = vmatpush1.msra.mxu0 0.0
    %2221 = vmatprep.subr.mxu0 0.0
    %2222 = vmatpush1.msra.mxu0 0.0
    %2223 = vmatprep.subr.mxu0 0.0
    %2224 = vmatpush1.msra.mxu0 0.0
    %2225 = vmatprep.subr.mxu0 0.0
    %2226 = vmatpush1.msra.mxu0 0.0
    %2227 = vmatprep.subr.mxu0 0.0
    %2228 = vmatpush1.msra.mxu0 0.0
    %2229 = vmatprep.subr.mxu0 0.0
    %2230 = vmatpush1.msra.mxu0 0.0
    %2231 = vmatprep.subr.mxu0 0.0
    %2232 = vmatpush1.msra.mxu0 0.0
    %2233 = vmatprep.subr.mxu0 0.0
    %2234 = vmatpush1.msra.mxu0 0.0
    %2235 = vmatprep.subr.mxu0 0.0
    %2236 = vmatpush1.msra.mxu0 0.0
    %2237 = vmatprep.subr.mxu0 0.0
    %2238 = vmatpush1.msra.mxu0 0.0
    %2239 = vmatprep.subr.mxu0 0.0
    %2240 = vmatpush1.msra.mxu0 0.0
    %2241 = vmatprep.subr.mxu0 0.0
    %2242 = vmatpush1.msra.mxu0 0.0
    %2243 = vmatprep.mubr.f32.mxu0 0.0
    %v2244 = vand.u32 %v1996, 4294901760
    %v2245 = vsub.f32 %v1996, %v2244
    %2246 = vmatmul.mubr.f32.gmra.mrb[0].mxu0 %v2245
    %v2247 = vpop.f32.mrb[0].mxu0
    %v2248 = vadd.f32 %v2166, %v2247
    %v2249 = vpop.f32.mrb[0].mxu0
    %2250 = vmatprep.mubr.f32.mxu0 0.0
    %v2251 = vand.u32 %v1999, 4294901760
    %v2252 = vsub.f32 %v1999, %v2251
    %2253 = vmatmul.mubr.f32.gmra.mrb[0].mxu0 %v2252
    %v2254 = vpop.f32.mrb[0].mxu0
    %v2255 = vadd.f32 %v2172, %v2254
    %v2256 = vpop.f32.mrb[0].mxu0
    %2257 = vdwg.mxu0
    %2258 = vmatprep.subr.mxu0 0.0
    %v2259 = vand.u32 %v759, 4294901760
    %2260 = vmatpush1.msra.mxu0 %v2259
    %2261 = vmatprep.subr.mxu0 0.0
    %v2262 = vand.u32 %v765, 4294901760
    %2263 = vmatpush1.msra.mxu0 %v2262
    %2264 = vmatprep.subr.mxu0 0.0
    %2265 = vmatpush1.msra.mxu0 0.0
    %2266 = vmatprep.subr.mxu0 0.0
    %2267 = vmatpush1.msra.mxu0 0.0
    %2268 = vmatprep.subr.mxu0 0.0
    %2269 = vmatpush1.msra.mxu0 0.0
    %2270 = vmatprep.subr.mxu0 0.0
    %2271 = vmatpush1.msra.mxu0 0.0
    %2272 = vmatprep.subr.mxu0 0.0
    %2273 = vmatpush1.msra.mxu0 0.0
    %2274 = vmatprep.subr.mxu0 0.0
    %2275 = vmatpush1.msra.mxu0 0.0
    %2276 = vmatprep.subr.mxu0 0.0
    %2277 = vmatpush1.msra.mxu0 0.0
    %2278 = vmatprep.subr.mxu0 0.0
    %2279 = vmatpush1.msra.mxu0 0.0
    %2280 = vmatprep.subr.mxu0 0.0
    %2281 = vmatpush1.msra.mxu0 0.0
    %2282 = vmatprep.subr.mxu0 0.0
    %2283 = vmatpush1.msra.mxu0 0.0
    %2284 = vmatprep.subr.mxu0 0.0
    %2285 = vmatpush1.msra.mxu0 0.0
    %2286 = vmatprep.subr.mxu0 0.0
    %2287 = vmatpush1.msra.mxu0 0.0
    %2288 = vmatprep.subr.mxu0 0.0
    %2289 = vmatpush1.msra.mxu0 0.0
    %2290 = vmatprep.subr.mxu0 0.0
    %2291 = vmatpush1.msra.mxu0 0.0
    %2292 = vmatprep.subr.mxu0 0.0
    %2293 = vmatpush1.msra.mxu0 0.0
    %2294 = vmatprep.subr.mxu0 0.0
    %2295 = vmatpush1.msra.mxu0 0.0
    %2296 = vmatprep.subr.mxu0 0.0
    %2297 = vmatpush1.msra.mxu0 0.0
    %2298 = vmatprep.subr.mxu0 0.0
    %2299 = vmatpush1.msra.mxu0 0.0
    %2300 = vmatprep.subr.mxu0 0.0
    %2301 = vmatpush1.msra.mxu0 0.0
    %2302 = vmatprep.subr.mxu0 0.0
    %2303 = vmatpush1.msra.mxu0 0.0
    %2304 = vmatprep.subr.mxu0 0.0
    %2305 = vmatpush1.msra.mxu0 0.0
    %2306 = vmatprep.subr.mxu0 0.0
    %2307 = vmatpush1.msra.mxu0 0.0
    %2308 = vmatprep.subr.mxu0 0.0
    %2309 = vmatpush1.msra.mxu0 0.0
    %2310 = vmatprep.subr.mxu0 0.0
    %2311 = vmatpush1.msra.mxu0 0.0
    %2312 = vmatprep.subr.mxu0 0.0
    %2313 = vmatpush1.msra.mxu0 0.0
    %2314 = vmatprep.subr.mxu0 0.0
    %2315 = vmatpush1.msra.mxu0 0.0
    %2316 = vmatprep.subr.mxu0 0.0
    %2317 = vmatpush1.msra.mxu0 0.0
    %2318 = vmatprep.subr.mxu0 0.0
    %2319 = vmatpush1.msra.mxu0 0.0
    %2320 = vmatprep.subr.mxu0 0.0
    %2321 = vmatpush1.msra.mxu0 0.0
    %2322 = vmatprep.subr.mxu0 0.0
    %2323 = vmatpush1.msra.mxu0 0.0
    %2324 = vmatprep.mubr.f32.mxu0 0.0
    %v2325 = vand.u32 %v1996, 4294901760
    %v2326 = vsub.f32 %v1996, %v2325
    %v2327 = vand.u32 %v2326, 4294901760
    %2328 = vmatmul.mubr.f32.gmra.mrb[0].mxu0 %v2327
    %v2329 = vpop.f32.mrb[0].mxu0
    %v2330 = vadd.f32 %v2248, %v2329
    %v2331 = vpop.f32.mrb[0].mxu0
    %2332 = vmatprep.mubr.f32.mxu0 0.0
    %v2333 = vand.u32 %v1999, 4294901760
    %v2334 = vsub.f32 %v1999, %v2333
    %v2335 = vand.u32 %v2334, 4294901760
    %2336 = vmatmul.mubr.f32.gmra.mrb[0].mxu0 %v2335
    %v2337 = vpop.f32.mrb[0].mxu0
    %v2338 = vadd.f32 %v2255, %v2337
    %v2339 = vpop.f32.mrb[0].mxu0
    %2340 = vdwg.mxu0
    %2341 = vmatprep.subr.mxu0 0.0
    %v2342 = vand.u32 %v759, 4294901760
    %v2343 = vsub.f32 %v759, %v2342
    %v2344 = vand.u32 %v2343, 4294901760
    %2345 = vmatpush1.msra.mxu0 %v2344
    %2346 = vmatprep.subr.mxu0 0.0
    %v2347 = vand.u32 %v765, 4294901760
    %v2348 = vsub.f32 %v765, %v2347
    %v2349 = vand.u32 %v2348, 4294901760
    %2350 = vmatpush1.msra.mxu0 %v2349
    %2351 = vmatprep.subr.mxu0 0.0
    %2352 = vmatpush1.msra.mxu0 0.0
    %2353 = vmatprep.subr.mxu0 0.0
    %2354 = vmatpush1.msra.mxu0 0.0
    %2355 = vmatprep.subr.mxu0 0.0
    %2356 = vmatpush1.msra.mxu0 0.0
    %2357 = vmatprep.subr.mxu0 0.0
    %2358 = vmatpush1.msra.mxu0 0.0
    %2359 = vmatprep.subr.mxu0 0.0
    %2360 = vmatpush1.msra.mxu0 0.0
    %2361 = vmatprep.subr.mxu0 0.0
    %2362 = vmatpush1.msra.mxu0 0.0
    %2363 = vmatprep.subr.mxu0 0.0
    %2364 = vmatpush1.msra.mxu0 0.0
    %2365 = vmatprep.subr.mxu0 0.0
    %2366 = vmatpush1.msra.mxu0 0.0
    %2367 = vmatprep.subr.mxu0 0.0
    %2368 = vmatpush1.msra.mxu0 0.0
    %2369 = vmatprep.subr.mxu0 0.0
    %2370 = vmatpush1.msra.mxu0 0.0
    %2371 = vmatprep.subr.mxu0 0.0
    %2372 = vmatpush1.msra.mxu0 0.0
    %2373 = vmatprep.subr.mxu0 0.0
    %2374 = vmatpush1.msra.mxu0 0.0
    %2375 = vmatprep.subr.mxu0 0.0
    %2376 = vmatpush1.msra.mxu0 0.0
    %2377 = vmatprep.subr.mxu0 0.0
    %2378 = vmatpush1.msra.mxu0 0.0
    %2379 = vmatprep.subr.mxu0 0.0
    %2380 = vmatpush1.msra.mxu0 0.0
    %2381 = vmatprep.subr.mxu0 0.0
    %2382 = vmatpush1.msra.mxu0 0.0
    %2383 = vmatprep.subr.mxu0 0.0
    %2384 = vmatpush1.msra.mxu0 0.0
    %2385 = vmatprep.subr.mxu0 0.0
    %2386 = vmatpush1.msra.mxu0 0.0
    %2387 = vmatprep.subr.mxu0 0.0
    %2388 = vmatpush1.msra.mxu0 0.0
    %2389 = vmatprep.subr.mxu0 0.0
    %2390 = vmatpush1.msra.mxu0 0.0
    %2391 = vmatprep.subr.mxu0 0.0
    %2392 = vmatpush1.msra.mxu0 0.0
    %2393 = vmatprep.subr.mxu0 0.0
    %2394 = vmatpush1.msra.mxu0 0.0
    %2395 = vmatprep.subr.mxu0 0.0
    %2396 = vmatpush1.msra.mxu0 0.0
    %2397 = vmatprep.subr.mxu0 0.0
    %2398 = vmatpush1.msra.mxu0 0.0
    %2399 = vmatprep.subr.mxu0 0.0
    %2400 = vmatpush1.msra.mxu0 0.0
    %2401 = vmatprep.subr.mxu0 0.0
    %2402 = vmatpush1.msra.mxu0 0.0
    %2403 = vmatprep.subr.mxu0 0.0
    %2404 = vmatpush1.msra.mxu0 0.0
    %2405 = vmatprep.subr.mxu0 0.0
    %2406 = vmatpush1.msra.mxu0 0.0
    %2407 = vmatprep.subr.mxu0 0.0
    %2408 = vmatpush1.msra.mxu0 0.0
    %2409 = vmatprep.subr.mxu0 0.0
    %2410 = vmatpush1.msra.mxu0 0.0
    %2411 = vmatprep.mubr.f32.mxu0 0.0
    %v2412 = vand.u32 %v1996, 4294901760
    %2413 = vmatmul.mubr.f32.gmra.mrb[0].mxu0 %v2412
    %v2414 = vpop.f32.mrb[0].mxu0
    %v2415 = vadd.f32 %v2330, %v2414
    %v2416 = vpop.f32.mrb[0].mxu0
    %2417 = vmatprep.mubr.f32.mxu0 0.0
    %v2418 = vand.u32 %v1999, 4294901760
    %2419 = vmatmul.mubr.f32.gmra.mrb[0].mxu0 %v2418
    %v2420 = vpop.f32.mrb[0].mxu0
    %v2421 = vadd.f32 %v2338, %v2420
    %v2422 = vpop.f32.mrb[0].mxu0
    %2423 = vdwg.mxu0
    %2424 = vmatprep.subr.mxu0 0.0
    %v2425 = vand.u32 %v759, 4294901760
    %2426 = vmatpush1.msra.mxu0 %v2425
    %2427 = vmatprep.subr.mxu0 0.0
    %v2428 = vand.u32 %v765, 4294901760
    %2429 = vmatpush1.msra.mxu0 %v2428
    %2430 = vmatprep.subr.mxu0 0.0
    %2431 = vmatpush1.msra.mxu0 0.0
    %2432 = vmatprep.subr.mxu0 0.0
    %2433 = vmatpush1.msra.mxu0 0.0
    %2434 = vmatprep.subr.mxu0 0.0
    %2435 = vmatpush1.msra.mxu0 0.0
    %2436 = vmatprep.subr.mxu0 0.0
    %2437 = vmatpush1.msra.mxu0 0.0
    %2438 = vmatprep.subr.mxu0 0.0
    %2439 = vmatpush1.msra.mxu0 0.0
    %2440 = vmatprep.subr.mxu0 0.0
    %2441 = vmatpush1.msra.mxu0 0.0
    %2442 = vmatprep.subr.mxu0 0.0
    %2443 = vmatpush1.msra.mxu0 0.0
    %2444 = vmatprep.subr.mxu0 0.0
    %2445 = vmatpush1.msra.mxu0 0.0
    %2446 = vmatprep.subr.mxu0 0.0
    %2447 = vmatpush1.msra.mxu0 0.0
    %2448 = vmatprep.subr.mxu0 0.0
    %2449 = vmatpush1.msra.mxu0 0.0
    %2450 = vmatprep.subr.mxu0 0.0
    %2451 = vmatpush1.msra.mxu0 0.0
    %2452 = vmatprep.subr.mxu0 0.0
    %2453 = vmatpush1.msra.mxu0 0.0
    %2454 = vmatprep.subr.mxu0 0.0
    %2455 = vmatpush1.msra.mxu0 0.0
    %2456 = vmatprep.subr.mxu0 0.0
    %2457 = vmatpush1.msra.mxu0 0.0
    %2458 = vmatprep.subr.mxu0 0.0
    %2459 = vmatpush1.msra.mxu0 0.0
    %2460 = vmatprep.subr.mxu0 0.0
    %2461 = vmatpush1.msra.mxu0 0.0
    %2462 = vmatprep.subr.mxu0 0.0
    %2463 = vmatpush1.msra.mxu0 0.0
    %2464 = vmatprep.subr.mxu0 0.0
    %2465 = vmatpush1.msra.mxu0 0.0
    %2466 = vmatprep.subr.mxu0 0.0
    %2467 = vmatpush1.msra.mxu0 0.0
    %2468 = vmatprep.subr.mxu0 0.0
    %2469 = vmatpush1.msra.mxu0 0.0
    %2470 = vmatprep.subr.mxu0 0.0
    %2471 = vmatpush1.msra.mxu0 0.0
    %2472 = vmatprep.subr.mxu0 0.0
    %2473 = vmatpush1.msra.mxu0 0.0
    %2474 = vmatprep.subr.mxu0 0.0
    %2475 = vmatpush1.msra.mxu0 0.0
    %2476 = vmatprep.subr.mxu0 0.0
    %2477 = vmatpush1.msra.mxu0 0.0
    %2478 = vmatprep.subr.mxu0 0.0
    %2479 = vmatpush1.msra.mxu0 0.0
    %2480 = vmatprep.subr.mxu0 0.0
    %2481 = vmatpush1.msra.mxu0 0.0
    %2482 = vmatprep.subr.mxu0 0.0
    %2483 = vmatpush1.msra.mxu0 0.0
    %2484 = vmatprep.subr.mxu0 0.0
    %2485 = vmatpush1.msra.mxu0 0.0
    %2486 = vmatprep.subr.mxu0 0.0
    %2487 = vmatpush1.msra.mxu0 0.0
    %2488 = vmatprep.subr.mxu0 0.0
    %2489 = vmatpush1.msra.mxu0 0.0
    %2490 = vmatprep.mubr.f32.mxu0 0.0
    %v2491 = vand.u32 %v1996, 4294901760
    %2492 = vmatmul.mubr.f32.gmra.mrb[0].mxu0 %v2491
    %v2493 = vpop.f32.mrb[0].mxu0
    %v2494 = vadd.f32 %v2415, %v2493
    %v2495 = vpop.f32.mrb[0].mxu0
    %2496 = vmatprep.mubr.f32.mxu0 0.0
    %v2497 = vand.u32 %v1999, 4294901760
    %2498 = vmatmul.mubr.f32.gmra.mrb[0].mxu0 %v2497
    %v2499 = vpop.f32.mrb[0].mxu0
    %v2500 = vadd.f32 %v2421, %v2499
    %v2501 = vpop.f32.mrb[0].mxu0
    %2502 = vdwg.mxu0
    %2503 = vst [vmem:[#allocation8] sm:$0xff] %v2494
    %2504 = vst [vmem:[#allocation8 + $0x8] sm:$0xff] %v2500
    // Predicated region
    $region30: #{tpu_custom_call.1} parent=1 // pred_check
      _
    $region31: #{tpu_custom_call.1} parent=1 // pred_check_branch
      %2506 = sbr.rel (0) target = $region33
    $region32: #{tpu_custom_call.1} parent=1 // pred_region
      %s2508 = ssub.s32 256, 256
      %2509 = vsyncadd [#allocation4], %s2508
      %s2510 = sshll.u32 [#allocation8], 4
      %s2511 = int_to_ptr.vmem [resolvable:$true] %s2510
      %2516 = dma.vmem_to_hbm [thread:$0]  %s2511, 256, %s4, [#allocation4], 128, 128, 8
    $region33: #{tpu_custom_call.1} parent=1 // pred_fallthru
      _
    // Predicated region
    $region34: #{tpu_custom_call.1} parent=1 // pred_check
      _
    $region35: #{tpu_custom_call.1} parent=1 // pred_check_branch
      %2518 = sbr.rel (0) target = $region37
    $region36: #{tpu_custom_call.1} parent=1 // pred_region
      %2519 = dma.done [#allocation4], 256
    $region37: #{tpu_custom_call.1} parent=1 // pred_fallthru
      _
    %2520 = vsyncpa [#allocation3], 1
    %2521 = vsyncpa [#allocation6], 1
    %2522 = vsyncpa [#allocation4], 1

</llo_original>
